<compile_context>
chip_gen: v7x
topology: tpu7x:2x2x1
jax: 0.10.0
libtpu: 0.0.40
codegen_flags: <defaults>
</compile_context>

<pallas_src>
import math

import jax
import jax.numpy as jnp
from jax.experimental import pallas as pl
from jax.experimental.pallas import tpu as pltpu

# ---------------------------- model hyper-params ----------------------------
VOCAB = 50
B = 2          # batch
S = 8          # sequence length
D_MODEL = 32   # d_model
NHEAD = 4
D_HEAD = D_MODEL // NHEAD
D_FF = 64      # dim_feedforward
OUT_DIM = 16   # out_dim of out_proj
LN_EPS = 1e-5

# ------------------------- packed parameter slab layout ----------------------
LANES = 128                      # lane-padded width of both slabs
ROW_WQKV = 0                     # (32, 96)
ROW_WAO = 32                     # (32, 32)
ROW_W1 = 64                      # (32, 64)
ROW_W2 = 96                      # (64, 32)
ROW_WOP = 160                    # (32, 16) -> zero-padded to (32, 128)
W_ROWS = 192
B_ROWS = 16                      # bias slab rows (only 9 used)


def _layernorm(x, w, b, eps=LN_EPS):
    # PyTorch nn.LayerNorm: biased variance over the last dim.
    mu = jnp.mean(x, axis=-1, keepdims=True)
    var = jnp.mean((x - mu) ** 2, axis=-1, keepdims=True)
    return (x - mu) * jax.lax.rsqrt(var + eps) * w + b


# ------------------------------- Pallas kernel -------------------------------
def transformer_kernel(x_ref,    # (B*S, D)      embedded tokens (all batches)
                       w_ref,    # (192, 128)    packed weight slab
                       b_ref,    # (16, 128)     packed bias / LN slab
                       o_ref):   # (B*S, 128)    lane-dense output slab
    x = x_ref[...]                                              # (B*S, D)

    # ---- static slices of the packed slabs (no per-weight DMA windows) ----
    wqkv = w_ref[ROW_WQKV:ROW_WQKV + D_MODEL, 0:3 * D_MODEL]    # (32, 96)
    wao = w_ref[ROW_WAO:ROW_WAO + D_MODEL, 0:D_MODEL]           # (32, 32)
    w1 = w_ref[ROW_W1:ROW_W1 + D_MODEL, 0:D_FF]                 # (32, 64)
    w2 = w_ref[ROW_W2:ROW_W2 + D_FF, 0:D_MODEL]                 # (64, 32)
    wop = w_ref[ROW_WOP:ROW_WOP + D_MODEL, :]                   # (32, 128) padded

    bqkv = b_ref[0:1, 0:3 * D_MODEL]                            # (1, 96)
    bao = b_ref[1:2, 0:D_MODEL]                                 # (1, 32)
    ln1w = b_ref[2:3, 0:D_MODEL]
    ln1b = b_ref[3:4, 0:D_MODEL]
    b1 = b_ref[4:5, 0:D_FF]                                     # (1, 64)
    b2 = b_ref[5:6, 0:D_MODEL]
    ln2w = b_ref[6:7, 0:D_MODEL]
    ln2b = b_ref[7:8, 0:D_MODEL]
    bop = b_ref[8:9, :]                                         # (1, 128) padded

    # ---- QKV projection on the merged (B*S, D) slab ----
    qkv = jnp.dot(x, wqkv, preferred_element_type=jnp.float32) + bqkv
    scale = 1.0 / math.sqrt(D_HEAD)
    q = qkv[:, 0:D_MODEL] * scale                               # pre-scaled once
    k = qkv[:, D_MODEL:2 * D_MODEL]
    v = qkv[:, 2 * D_MODEL:3 * D_MODEL]

    # ---- multi-head self-attention: static loop over batch (attention is
    #      per-batch); head concat folded into the output projection ----
    batch_rows = []
    for b in range(B):                                          # B = 2, unrolled
        rlo, rhi = b * S, (b + 1) * S
        acc = jnp.zeros((S, D_MODEL), jnp.float32)
        for h in range(NHEAD):                                  # static head loop
            lo, hi = h * D_HEAD, (h + 1) * D_HEAD
            qh = q[rlo:rhi, lo:hi]
            kh = k[rlo:rhi, lo:hi]
            vh = v[rlo:rhi, lo:hi]
            s = jnp.dot(qh, kh.T, preferred_element_type=jnp.float32)  # (S, S)
            s = s - jnp.max(s, axis=-1, keepdims=True)
            p = jnp.exp(s)
            p = p * pl.reciprocal(jnp.sum(p, axis=-1, keepdims=True))  # exact
            oh = jnp.dot(p, vh, preferred_element_type=jnp.float32)    # (S, D_HEAD)
            # fold the head-concat into the attention out-projection
            acc = acc + jnp.dot(oh, wao[lo:hi, :],
                                preferred_element_type=jnp.float32)
        batch_rows.append(acc)
    attn = jnp.concatenate(batch_rows, axis=0) + bao            # (B*S, D), row concat

    # ---- residual + LayerNorm 1 (post-norm, PyTorch default) ----
    x = _layernorm(x + attn, ln1w, ln1b)

    # ---- feed-forward (linear -> relu -> linear) ----
    h1 = jnp.maximum(
        jnp.dot(x, w1, preferred_element_type=jnp.float32) + b1, 0.0)
    h2 = jnp.dot(h1, w2, preferred_element_type=jnp.float32) + b2

    # ---- residual + LayerNorm 2 ----
    x = _layernorm(x + h2, ln2w, ln2b)

    # ---- final out_proj, lane-dense (columns OUT_DIM:128 are zero) ----
    o_ref[...] = jnp.dot(x, wop, preferred_element_type=jnp.float32) + bop


# --------------------------- parameter slab packing --------------------------
def pack_params(p):
    W = jnp.zeros((W_ROWS, LANES), jnp.float32)
    W = W.at[ROW_WQKV:ROW_WQKV + D_MODEL, 0:3 * D_MODEL].set(p["wqkv"])
    W = W.at[ROW_WAO:ROW_WAO + D_MODEL, 0:D_MODEL].set(p["wao"])
    W = W.at[ROW_W1:ROW_W1 + D_MODEL, 0:D_FF].set(p["w1"])
    W = W.at[ROW_W2:ROW_W2 + D_FF, 0:D_MODEL].set(p["w2"])
    W = W.at[ROW_WOP:ROW_WOP + D_MODEL, 0:OUT_DIM].set(p["wop"])

    Bv = jnp.zeros((B_ROWS, LANES), jnp.float32)
    Bv = Bv.at[0, 0:3 * D_MODEL].set(p["bqkv"][0])
    Bv = Bv.at[1, 0:D_MODEL].set(p["bao"][0])
    Bv = Bv.at[2, 0:D_MODEL].set(p["ln1w"][0])
    Bv = Bv.at[3, 0:D_MODEL].set(p["ln1b"][0])
    Bv = Bv.at[4, 0:D_FF].set(p["b1"][0])
    Bv = Bv.at[5, 0:D_MODEL].set(p["b2"][0])
    Bv = Bv.at[6, 0:D_MODEL].set(p["ln2w"][0])
    Bv = Bv.at[7, 0:D_MODEL].set(p["ln2b"][0])
    Bv = Bv.at[8, 0:OUT_DIM].set(p["bop"][0])
    return W, Bv


# --------------------------------- wrapper ----------------------------------
def transformer_forward(tokens, params):
    """tokens: int32 (B, S).  Returns float32 (B, S, OUT_DIM)."""
    # Embedding lookup is plain-JAX glue (gather); the hot path is the kernel.
    x_emb = jnp.take(params["emb"], tokens, axis=0).reshape(B * S, D_MODEL)
    W, Bv = pack_params(params)

    out_padded = pl.pallas_call(
        transformer_kernel,
        out_shape=jax.ShapeDtypeStruct((B * S, LANES), jnp.float32),
        grid_spec=pltpu.PrefetchScalarGridSpec(
            num_scalar_prefetch=0,
            grid=(1,),                                    # single grid step
            in_specs=[
                pl.BlockSpec((B * S, D_MODEL), lambda i: (0, 0)),
                pl.BlockSpec((W_ROWS, LANES), lambda i: (0, 0)),
                pl.BlockSpec((B_ROWS, LANES), lambda i: (0, 0)),
            ],
            out_specs=pl.BlockSpec((B * S, LANES), lambda i: (0, 0)),
        ),
        compiler_params=pltpu.CompilerParams(
            dimension_semantics=("arbitrary",)),
    )(x_emb, W, Bv)

    return out_padded[:, :OUT_DIM].reshape(B, S, OUT_DIM)


# ------------------------- pure-JAX reference (check) ------------------------
def reference_forward(tokens, p):
    x = jnp.take(p["emb"], tokens, axis=0)                     # (B, S, D)

    def one(x):                                                # x: (S, D)
        qkv = x @ p["wqkv"] + p["bqkv"]
        q, k, v = qkv[:, :D_MODEL], qkv[:, D_MODEL:2 * D_MODEL], qkv[:, 2 * D_MODEL:]
        outs = []
        for h in range(NHEAD):
            lo, hi = h * D_HEAD, (h + 1) * D_HEAD
            s = (q[:, lo:hi] @ k[:, lo:hi].T) / math.sqrt(D_HEAD)
            outs.append(jax.nn.softmax(s, axis=-1) @ v[:, lo:hi])
        attn = jnp.concatenate(outs, axis=-1) @ p["wao"] + p["bao"]
        x = _layernorm(x + attn, p["ln1w"], p["ln1b"])
        h2 = jnp.maximum(x @ p["w1"] + p["b1"], 0.0) @ p["w2"] + p["b2"]
        x = _layernorm(x + h2, p["ln2w"], p["ln2b"])
        return x @ p["wop"] + p["bop"]

    return jax.vmap(one)(x)


# ----------------------------- parameter init --------------------------------
def init_params(key):
    ks = jax.random.split(key, 10)
    f32 = jnp.float32
    sc = 0.02
    # Weights stored pre-transposed to (in, out); biases as (1, out) rows.
    return {
        "emb":  (jax.random.normal(ks[0], (VOCAB, D_MODEL)) * sc).astype(f32),
        "wqkv": (jax.random.normal(ks[1], (D_MODEL, 3 * D_MODEL)) * sc).astype(f32),
        "bqkv": jnp.zeros((1, 3 * D_MODEL), f32),
        "wao":  (jax.random.normal(ks[2], (D_MODEL, D_MODEL)) * sc).astype(f32),
        "bao":  jnp.zeros((1, D_MODEL), f32),
        "ln1w": jnp.ones((1, D_MODEL), f32),
        "ln1b": jnp.zeros((1, D_MODEL), f32),
        "w1":   (jax.random.normal(ks[3], (D_MODEL, D_FF)) * sc).astype(f32),
        "b1":   jnp.zeros((1, D_FF), f32),
        "w2":   (jax.random.normal(ks[4], (D_FF, D_MODEL)) * sc).astype(f32),
        "b2":   jnp.zeros((1, D_MODEL), f32),
        "ln2w": jnp.ones((1, D_MODEL), f32),
        "ln2b": jnp.zeros((1, D_MODEL), f32),
        "wop":  (jax.random.normal(ks[5], (D_MODEL, OUT_DIM)) * sc).astype(f32),
        "bop":  (jax.random.normal(ks[6], (1, OUT_DIM)) * sc).astype(f32),
    }


if __name__ == "__main__":
    key = jax.random.PRNGKey(0)
    pkey, tkey = jax.random.split(key)
    params = init_params(pkey)
    tokens = jax.random.randint(tkey, (B, S), 0, VOCAB, dtype=jnp.int32)

    out = transformer_forward(tokens, params)
    out = jax.block_until_ready(out)

    ref = jax.block_until_ready(reference_forward(tokens, params))
    assert out.shape == (B, S, OUT_DIM)
    assert jnp.allclose(out, ref, atol=1e-4, rtol=1e-4), "mismatch vs JAX reference"

    print("KERNEL_OK")
</pallas_src>

<mosaic_0001>
module attributes {stable_mosaic.version = 11 : i64} {
  func.func @transformer_kernel(%arg0: i32, %arg1: memref<16x32xf32, #tpu.memory_space<vmem>>, %arg2: memref<192x128xf32, #tpu.memory_space<vmem>>, %arg3: memref<16x128xf32, #tpu.memory_space<vmem>>, %arg4: memref<16x128xf32, #tpu.memory_space<vmem>>) attributes {dimension_semantics = [#tpu.dimension_semantics<arbitrary>], iteration_bounds = array<i64: 1>, scalar_prefetch = 0 : i64, scratch_operands = 0 : i64, tpu.core_type = #tpu.core_type<tc>, window_params = [{pipeline_mode = #tpu.pipeline_mode<synchronous>, transform_indices = @transform_0, window_bounds = array<i64: 16, 32>}, {pipeline_mode = #tpu.pipeline_mode<synchronous>, transform_indices = @transform_1, window_bounds = array<i64: 192, 128>}, {pipeline_mode = #tpu.pipeline_mode<synchronous>, transform_indices = @transform_2, window_bounds = array<i64: 16, 128>}, {pipeline_mode = #tpu.pipeline_mode<synchronous>, transform_indices = @transform_3, window_bounds = array<i64: 16, 128>}]} {
    %c0 = arith.constant 0 : index
    %c0_0 = arith.constant 0 : index
    %0 = vector.load %arg1[%c0, %c0_0] : memref<16x32xf32, #tpu.memory_space<vmem>>, vector<16x32xf32>
    %c0_1 = arith.constant 0 : index
    %c0_2 = arith.constant 0 : index
    %1 = vector.load %arg2[%c0_1, %c0_2] : memref<192x128xf32, #tpu.memory_space<vmem>>, vector<32x96xf32>
    %c32 = arith.constant 32 : index
    %c0_3 = arith.constant 0 : index
    %2 = vector.load %arg2[%c32, %c0_3] : memref<192x128xf32, #tpu.memory_space<vmem>>, vector<32x32xf32>
    %c64 = arith.constant 64 : index
    %c0_4 = arith.constant 0 : index
    %3 = vector.load %arg2[%c64, %c0_4] : memref<192x128xf32, #tpu.memory_space<vmem>>, vector<32x64xf32>
    %c96 = arith.constant 96 : index
    %c0_5 = arith.constant 0 : index
    %4 = vector.load %arg2[%c96, %c0_5] : memref<192x128xf32, #tpu.memory_space<vmem>>, vector<64x32xf32>
    %c160 = arith.constant 160 : index
    %c0_6 = arith.constant 0 : index
    %5 = vector.load %arg2[%c160, %c0_6] : memref<192x128xf32, #tpu.memory_space<vmem>>, vector<32x128xf32>
    %c0_7 = arith.constant 0 : index
    %c0_8 = arith.constant 0 : index
    %6 = vector.load %arg3[%c0_7, %c0_8] : memref<16x128xf32, #tpu.memory_space<vmem>>, vector<1x96xf32>
    %c1 = arith.constant 1 : index
    %c0_9 = arith.constant 0 : index
    %7 = vector.load %arg3[%c1, %c0_9] : memref<16x128xf32, #tpu.memory_space<vmem>>, vector<1x32xf32>
    %c2 = arith.constant 2 : index
    %c0_10 = arith.constant 0 : index
    %8 = vector.load %arg3[%c2, %c0_10] : memref<16x128xf32, #tpu.memory_space<vmem>>, vector<1x32xf32>
    %c3 = arith.constant 3 : index
    %c0_11 = arith.constant 0 : index
    %9 = vector.load %arg3[%c3, %c0_11] : memref<16x128xf32, #tpu.memory_space<vmem>>, vector<1x32xf32>
    %c4 = arith.constant 4 : index
    %c0_12 = arith.constant 0 : index
    %10 = vector.load %arg3[%c4, %c0_12] : memref<16x128xf32, #tpu.memory_space<vmem>>, vector<1x64xf32>
    %c5 = arith.constant 5 : index
    %c0_13 = arith.constant 0 : index
    %11 = vector.load %arg3[%c5, %c0_13] : memref<16x128xf32, #tpu.memory_space<vmem>>, vector<1x32xf32>
    %c6 = arith.constant 6 : index
    %c0_14 = arith.constant 0 : index
    %12 = vector.load %arg3[%c6, %c0_14] : memref<16x128xf32, #tpu.memory_space<vmem>>, vector<1x32xf32>
    %c7 = arith.constant 7 : index
    %c0_15 = arith.constant 0 : index
    %13 = vector.load %arg3[%c7, %c0_15] : memref<16x128xf32, #tpu.memory_space<vmem>>, vector<1x32xf32>
    %c8 = arith.constant 8 : index
    %c0_16 = arith.constant 0 : index
    %14 = vector.load %arg3[%c8, %c0_16] : memref<16x128xf32, #tpu.memory_space<vmem>>, vector<1x128xf32>
    %cst = arith.constant dense<0.000000e+00> : vector<16x96xf32>
    %15 = tpu.matmul %0, %1, %cst {dimension_numbers = #tpu.dot_dimension_numbers<[1], [0], [0], [1], [0, 0, 1, 1], [], []>} : vector<16x32xf32>, vector<32x96xf32>, vector<16x96xf32> -> vector<16x96xf32>
    %16 = vector.broadcast %6 : vector<1x96xf32> to vector<16x96xf32>
    %17 = arith.addf %15, %16 : vector<16x96xf32>
    %18 = vector.extract_strided_slice %17 {offsets = [0, 0], sizes = [16, 32], strides = [1, 1]} : vector<16x96xf32> to vector<16x32xf32>
    %cst_17 = arith.constant 0.353553385 : f32
    %19 = vector.broadcast %cst_17 : f32 to vector<16x32xf32>
    %20 = arith.mulf %18, %19 : vector<16x32xf32>
    %21 = vector.extract_strided_slice %17 {offsets = [0, 32], sizes = [16, 32], strides = [1, 1]} : vector<16x96xf32> to vector<16x32xf32>
    %22 = vector.extract_strided_slice %17 {offsets = [0, 64], sizes = [16, 32], strides = [1, 1]} : vector<16x96xf32> to vector<16x32xf32>
    %cst_18 = arith.constant 0.000000e+00 : f32
    %23 = vector.broadcast %cst_18 : f32 to vector<8x32xf32>
    %24 = vector.extract_strided_slice %20 {offsets = [0, 0], sizes = [8, 8], strides = [1, 1]} : vector<16x32xf32> to vector<8x8xf32>
    %25 = vector.extract_strided_slice %21 {offsets = [0, 0], sizes = [8, 8], strides = [1, 1]} : vector<16x32xf32> to vector<8x8xf32>
    %26 = vector.extract_strided_slice %22 {offsets = [0, 0], sizes = [8, 8], strides = [1, 1]} : vector<16x32xf32> to vector<8x8xf32>
    %27 = tpu.transpose %25, [1, 0] : vector<8x8xf32> -> vector<8x8xf32>
    %cst_19 = arith.constant dense<0.000000e+00> : vector<8x8xf32>
    %28 = tpu.matmul %24, %27, %cst_19 {dimension_numbers = #tpu.dot_dimension_numbers<[1], [0], [0], [1], [0, 0, 1, 1], [], []>} : vector<8x8xf32>, vector<8x8xf32>, vector<8x8xf32> -> vector<8x8xf32>
    %cst_20 = arith.constant dense<0xFF800000> : vector<8xf32>
    %29 = vector.multi_reduction <maximumf>, %28, %cst_20 [1] : vector<8x8xf32> to vector<8xf32>
    %30 = vector.shape_cast %29 : vector<8xf32> to vector<8x1xf32>
    %31 = vector.broadcast %30 : vector<8x1xf32> to vector<8x8xf32>
    %32 = arith.subf %28, %31 : vector<8x8xf32>
    %33 = math.exp %32 : vector<8x8xf32>
    %cst_21 = arith.constant dense<0.000000e+00> : vector<8xf32>
    %34 = vector.multi_reduction <add>, %33, %cst_21 [1] : vector<8x8xf32> to vector<8xf32>
    %35 = vector.shape_cast %34 : vector<8xf32> to vector<8x1xf32>
    %36 = tpu.reciprocal %35 : vector<8x1xf32> -> vector<8x1xf32>
    %37 = vector.broadcast %36 : vector<8x1xf32> to vector<8x8xf32>
    %38 = arith.mulf %33, %37 : vector<8x8xf32>
    %cst_22 = arith.constant dense<0.000000e+00> : vector<8x8xf32>
    %39 = tpu.matmul %38, %26, %cst_22 {dimension_numbers = #tpu.dot_dimension_numbers<[1], [0], [0], [1], [0, 0, 1, 1], [], []>} : vector<8x8xf32>, vector<8x8xf32>, vector<8x8xf32> -> vector<8x8xf32>
    %40 = vector.extract_strided_slice %2 {offsets = [0, 0], sizes = [8, 32], strides = [1, 1]} : vector<32x32xf32> to vector<8x32xf32>
    %cst_23 = arith.constant dense<0.000000e+00> : vector<8x32xf32>
    %41 = tpu.matmul %39, %40, %cst_23 {dimension_numbers = #tpu.dot_dimension_numbers<[1], [0], [0], [1], [0, 0, 1, 1], [], []>} : vector<8x8xf32>, vector<8x32xf32>, vector<8x32xf32> -> vector<8x32xf32>
    %42 = arith.addf %23, %41 : vector<8x32xf32>
    %43 = vector.extract_strided_slice %20 {offsets = [0, 8], sizes = [8, 8], strides = [1, 1]} : vector<16x32xf32> to vector<8x8xf32>
    %44 = vector.extract_strided_slice %21 {offsets = [0, 8], sizes = [8, 8], strides = [1, 1]} : vector<16x32xf32> to vector<8x8xf32>
    %45 = vector.extract_strided_slice %22 {offsets = [0, 8], sizes = [8, 8], strides = [1, 1]} : vector<16x32xf32> to vector<8x8xf32>
    %46 = tpu.transpose %44, [1, 0] : vector<8x8xf32> -> vector<8x8xf32>
    %cst_24 = arith.constant dense<0.000000e+00> : vector<8x8xf32>
    %47 = tpu.matmul %43, %46, %cst_24 {dimension_numbers = #tpu.dot_dimension_numbers<[1], [0], [0], [1], [0, 0, 1, 1], [], []>} : vector<8x8xf32>, vector<8x8xf32>, vector<8x8xf32> -> vector<8x8xf32>
    %cst_25 = arith.constant dense<0xFF800000> : vector<8xf32>
    %48 = vector.multi_reduction <maximumf>, %47, %cst_25 [1] : vector<8x8xf32> to vector<8xf32>
    %49 = vector.shape_cast %48 : vector<8xf32> to vector<8x1xf32>
    %50 = vector.broadcast %49 : vector<8x1xf32> to vector<8x8xf32>
    %51 = arith.subf %47, %50 : vector<8x8xf32>
    %52 = math.exp %51 : vector<8x8xf32>
    %cst_26 = arith.constant dense<0.000000e+00> : vector<8xf32>
    %53 = vector.multi_reduction <add>, %52, %cst_26 [1] : vector<8x8xf32> to vector<8xf32>
    %54 = vector.shape_cast %53 : vector<8xf32> to vector<8x1xf32>
    %55 = tpu.reciprocal %54 : vector<8x1xf32> -> vector<8x1xf32>
    %56 = vector.broadcast %55 : vector<8x1xf32> to vector<8x8xf32>
    %57 = arith.mulf %52, %56 : vector<8x8xf32>
    %cst_27 = arith.constant dense<0.000000e+00> : vector<8x8xf32>
    %58 = tpu.matmul %57, %45, %cst_27 {dimension_numbers = #tpu.dot_dimension_numbers<[1], [0], [0], [1], [0, 0, 1, 1], [], []>} : vector<8x8xf32>, vector<8x8xf32>, vector<8x8xf32> -> vector<8x8xf32>
    %59 = vector.extract_strided_slice %2 {offsets = [8, 0], sizes = [8, 32], strides = [1, 1]} : vector<32x32xf32> to vector<8x32xf32>
    %cst_28 = arith.constant dense<0.000000e+00> : vector<8x32xf32>
    %60 = tpu.matmul %58, %59, %cst_28 {dimension_numbers = #tpu.dot_dimension_numbers<[1], [0], [0], [1], [0, 0, 1, 1], [], []>} : vector<8x8xf32>, vector<8x32xf32>, vector<8x32xf32> -> vector<8x32xf32>
    %61 = arith.addf %42, %60 : vector<8x32xf32>
    %62 = vector.extract_strided_slice %20 {offsets = [0, 16], sizes = [8, 8], strides = [1, 1]} : vector<16x32xf32> to vector<8x8xf32>
    %63 = vector.extract_strided_slice %21 {offsets = [0, 16], sizes = [8, 8], strides = [1, 1]} : vector<16x32xf32> to vector<8x8xf32>
    %64 = vector.extract_strided_slice %22 {offsets = [0, 16], sizes = [8, 8], strides = [1, 1]} : vector<16x32xf32> to vector<8x8xf32>
    %65 = tpu.transpose %63, [1, 0] : vector<8x8xf32> -> vector<8x8xf32>
    %cst_29 = arith.constant dense<0.000000e+00> : vector<8x8xf32>
    %66 = tpu.matmul %62, %65, %cst_29 {dimension_numbers = #tpu.dot_dimension_numbers<[1], [0], [0], [1], [0, 0, 1, 1], [], []>} : vector<8x8xf32>, vector<8x8xf32>, vector<8x8xf32> -> vector<8x8xf32>
    %cst_30 = arith.constant dense<0xFF800000> : vector<8xf32>
    %67 = vector.multi_reduction <maximumf>, %66, %cst_30 [1] : vector<8x8xf32> to vector<8xf32>
    %68 = vector.shape_cast %67 : vector<8xf32> to vector<8x1xf32>
    %69 = vector.broadcast %68 : vector<8x1xf32> to vector<8x8xf32>
    %70 = arith.subf %66, %69 : vector<8x8xf32>
    %71 = math.exp %70 : vector<8x8xf32>
    %cst_31 = arith.constant dense<0.000000e+00> : vector<8xf32>
    %72 = vector.multi_reduction <add>, %71, %cst_31 [1] : vector<8x8xf32> to vector<8xf32>
    %73 = vector.shape_cast %72 : vector<8xf32> to vector<8x1xf32>
    %74 = tpu.reciprocal %73 : vector<8x1xf32> -> vector<8x1xf32>
    %75 = vector.broadcast %74 : vector<8x1xf32> to vector<8x8xf32>
    %76 = arith.mulf %71, %75 : vector<8x8xf32>
    %cst_32 = arith.constant dense<0.000000e+00> : vector<8x8xf32>
    %77 = tpu.matmul %76, %64, %cst_32 {dimension_numbers = #tpu.dot_dimension_numbers<[1], [0], [0], [1], [0, 0, 1, 1], [], []>} : vector<8x8xf32>, vector<8x8xf32>, vector<8x8xf32> -> vector<8x8xf32>
    %78 = vector.extract_strided_slice %2 {offsets = [16, 0], sizes = [8, 32], strides = [1, 1]} : vector<32x32xf32> to vector<8x32xf32>
    %cst_33 = arith.constant dense<0.000000e+00> : vector<8x32xf32>
    %79 = tpu.matmul %77, %78, %cst_33 {dimension_numbers = #tpu.dot_dimension_numbers<[1], [0], [0], [1], [0, 0, 1, 1], [], []>} : vector<8x8xf32>, vector<8x32xf32>, vector<8x32xf32> -> vector<8x32xf32>
    %80 = arith.addf %61, %79 : vector<8x32xf32>
    %81 = vector.extract_strided_slice %20 {offsets = [0, 24], sizes = [8, 8], strides = [1, 1]} : vector<16x32xf32> to vector<8x8xf32>
    %82 = vector.extract_strided_slice %21 {offsets = [0, 24], sizes = [8, 8], strides = [1, 1]} : vector<16x32xf32> to vector<8x8xf32>
    %83 = vector.extract_strided_slice %22 {offsets = [0, 24], sizes = [8, 8], strides = [1, 1]} : vector<16x32xf32> to vector<8x8xf32>
    %84 = tpu.transpose %82, [1, 0] : vector<8x8xf32> -> vector<8x8xf32>
    %cst_34 = arith.constant dense<0.000000e+00> : vector<8x8xf32>
    %85 = tpu.matmul %81, %84, %cst_34 {dimension_numbers = #tpu.dot_dimension_numbers<[1], [0], [0], [1], [0, 0, 1, 1], [], []>} : vector<8x8xf32>, vector<8x8xf32>, vector<8x8xf32> -> vector<8x8xf32>
    %cst_35 = arith.constant dense<0xFF800000> : vector<8xf32>
    %86 = vector.multi_reduction <maximumf>, %85, %cst_35 [1] : vector<8x8xf32> to vector<8xf32>
    %87 = vector.shape_cast %86 : vector<8xf32> to vector<8x1xf32>
    %88 = vector.broadcast %87 : vector<8x1xf32> to vector<8x8xf32>
    %89 = arith.subf %85, %88 : vector<8x8xf32>
    %90 = math.exp %89 : vector<8x8xf32>
    %cst_36 = arith.constant dense<0.000000e+00> : vector<8xf32>
    %91 = vector.multi_reduction <add>, %90, %cst_36 [1] : vector<8x8xf32> to vector<8xf32>
    %92 = vector.shape_cast %91 : vector<8xf32> to vector<8x1xf32>
    %93 = tpu.reciprocal %92 : vector<8x1xf32> -> vector<8x1xf32>
    %94 = vector.broadcast %93 : vector<8x1xf32> to vector<8x8xf32>
    %95 = arith.mulf %90, %94 : vector<8x8xf32>
    %cst_37 = arith.constant dense<0.000000e+00> : vector<8x8xf32>
    %96 = tpu.matmul %95, %83, %cst_37 {dimension_numbers = #tpu.dot_dimension_numbers<[1], [0], [0], [1], [0, 0, 1, 1], [], []>} : vector<8x8xf32>, vector<8x8xf32>, vector<8x8xf32> -> vector<8x8xf32>
    %97 = vector.extract_strided_slice %2 {offsets = [24, 0], sizes = [8, 32], strides = [1, 1]} : vector<32x32xf32> to vector<8x32xf32>
    %cst_38 = arith.constant dense<0.000000e+00> : vector<8x32xf32>
    %98 = tpu.matmul %96, %97, %cst_38 {dimension_numbers = #tpu.dot_dimension_numbers<[1], [0], [0], [1], [0, 0, 1, 1], [], []>} : vector<8x8xf32>, vector<8x32xf32>, vector<8x32xf32> -> vector<8x32xf32>
    %99 = arith.addf %80, %98 : vector<8x32xf32>
    %cst_39 = arith.constant 0.000000e+00 : f32
    %100 = vector.broadcast %cst_39 : f32 to vector<8x32xf32>
    %101 = vector.extract_strided_slice %20 {offsets = [8, 0], sizes = [8, 8], strides = [1, 1]} : vector<16x32xf32> to vector<8x8xf32>
    %102 = vector.extract_strided_slice %21 {offsets = [8, 0], sizes = [8, 8], strides = [1, 1]} : vector<16x32xf32> to vector<8x8xf32>
    %103 = vector.extract_strided_slice %22 {offsets = [8, 0], sizes = [8, 8], strides = [1, 1]} : vector<16x32xf32> to vector<8x8xf32>
    %104 = tpu.transpose %102, [1, 0] : vector<8x8xf32> -> vector<8x8xf32>
    %cst_40 = arith.constant dense<0.000000e+00> : vector<8x8xf32>
    %105 = tpu.matmul %101, %104, %cst_40 {dimension_numbers = #tpu.dot_dimension_numbers<[1], [0], [0], [1], [0, 0, 1, 1], [], []>} : vector<8x8xf32>, vector<8x8xf32>, vector<8x8xf32> -> vector<8x8xf32>
    %cst_41 = arith.constant dense<0xFF800000> : vector<8xf32>
    %106 = vector.multi_reduction <maximumf>, %105, %cst_41 [1] : vector<8x8xf32> to vector<8xf32>
    %107 = vector.shape_cast %106 : vector<8xf32> to vector<8x1xf32>
    %108 = vector.broadcast %107 : vector<8x1xf32> to vector<8x8xf32>
    %109 = arith.subf %105, %108 : vector<8x8xf32>
    %110 = math.exp %109 : vector<8x8xf32>
    %cst_42 = arith.constant dense<0.000000e+00> : vector<8xf32>
    %111 = vector.multi_reduction <add>, %110, %cst_42 [1] : vector<8x8xf32> to vector<8xf32>
    %112 = vector.shape_cast %111 : vector<8xf32> to vector<8x1xf32>
    %113 = tpu.reciprocal %112 : vector<8x1xf32> -> vector<8x1xf32>
    %114 = vector.broadcast %113 : vector<8x1xf32> to vector<8x8xf32>
    %115 = arith.mulf %110, %114 : vector<8x8xf32>
    %cst_43 = arith.constant dense<0.000000e+00> : vector<8x8xf32>
    %116 = tpu.matmul %115, %103, %cst_43 {dimension_numbers = #tpu.dot_dimension_numbers<[1], [0], [0], [1], [0, 0, 1, 1], [], []>} : vector<8x8xf32>, vector<8x8xf32>, vector<8x8xf32> -> vector<8x8xf32>
    %117 = vector.extract_strided_slice %2 {offsets = [0, 0], sizes = [8, 32], strides = [1, 1]} : vector<32x32xf32> to vector<8x32xf32>
    %cst_44 = arith.constant dense<0.000000e+00> : vector<8x32xf32>
    %118 = tpu.matmul %116, %117, %cst_44 {dimension_numbers = #tpu.dot_dimension_numbers<[1], [0], [0], [1], [0, 0, 1, 1], [], []>} : vector<8x8xf32>, vector<8x32xf32>, vector<8x32xf32> -> vector<8x32xf32>
    %119 = arith.addf %100, %118 : vector<8x32xf32>
    %120 = vector.extract_strided_slice %20 {offsets = [8, 8], sizes = [8, 8], strides = [1, 1]} : vector<16x32xf32> to vector<8x8xf32>
    %121 = vector.extract_strided_slice %21 {offsets = [8, 8], sizes = [8, 8], strides = [1, 1]} : vector<16x32xf32> to vector<8x8xf32>
    %122 = vector.extract_strided_slice %22 {offsets = [8, 8], sizes = [8, 8], strides = [1, 1]} : vector<16x32xf32> to vector<8x8xf32>
    %123 = tpu.transpose %121, [1, 0] : vector<8x8xf32> -> vector<8x8xf32>
    %cst_45 = arith.constant dense<0.000000e+00> : vector<8x8xf32>
    %124 = tpu.matmul %120, %123, %cst_45 {dimension_numbers = #tpu.dot_dimension_numbers<[1], [0], [0], [1], [0, 0, 1, 1], [], []>} : vector<8x8xf32>, vector<8x8xf32>, vector<8x8xf32> -> vector<8x8xf32>
    %cst_46 = arith.constant dense<0xFF800000> : vector<8xf32>
    %125 = vector.multi_reduction <maximumf>, %124, %cst_46 [1] : vector<8x8xf32> to vector<8xf32>
    %126 = vector.shape_cast %125 : vector<8xf32> to vector<8x1xf32>
    %127 = vector.broadcast %126 : vector<8x1xf32> to vector<8x8xf32>
    %128 = arith.subf %124, %127 : vector<8x8xf32>
    %129 = math.exp %128 : vector<8x8xf32>
    %cst_47 = arith.constant dense<0.000000e+00> : vector<8xf32>
    %130 = vector.multi_reduction <add>, %129, %cst_47 [1] : vector<8x8xf32> to vector<8xf32>
    %131 = vector.shape_cast %130 : vector<8xf32> to vector<8x1xf32>
    %132 = tpu.reciprocal %131 : vector<8x1xf32> -> vector<8x1xf32>
    %133 = vector.broadcast %132 : vector<8x1xf32> to vector<8x8xf32>
    %134 = arith.mulf %129, %133 : vector<8x8xf32>
    %cst_48 = arith.constant dense<0.000000e+00> : vector<8x8xf32>
    %135 = tpu.matmul %134, %122, %cst_48 {dimension_numbers = #tpu.dot_dimension_numbers<[1], [0], [0], [1], [0, 0, 1, 1], [], []>} : vector<8x8xf32>, vector<8x8xf32>, vector<8x8xf32> -> vector<8x8xf32>
    %136 = vector.extract_strided_slice %2 {offsets = [8, 0], sizes = [8, 32], strides = [1, 1]} : vector<32x32xf32> to vector<8x32xf32>
    %cst_49 = arith.constant dense<0.000000e+00> : vector<8x32xf32>
    %137 = tpu.matmul %135, %136, %cst_49 {dimension_numbers = #tpu.dot_dimension_numbers<[1], [0], [0], [1], [0, 0, 1, 1], [], []>} : vector<8x8xf32>, vector<8x32xf32>, vector<8x32xf32> -> vector<8x32xf32>
    %138 = arith.addf %119, %137 : vector<8x32xf32>
    %139 = vector.extract_strided_slice %20 {offsets = [8, 16], sizes = [8, 8], strides = [1, 1]} : vector<16x32xf32> to vector<8x8xf32>
    %140 = vector.extract_strided_slice %21 {offsets = [8, 16], sizes = [8, 8], strides = [1, 1]} : vector<16x32xf32> to vector<8x8xf32>
    %141 = vector.extract_strided_slice %22 {offsets = [8, 16], sizes = [8, 8], strides = [1, 1]} : vector<16x32xf32> to vector<8x8xf32>
    %142 = tpu.transpose %140, [1, 0] : vector<8x8xf32> -> vector<8x8xf32>
    %cst_50 = arith.constant dense<0.000000e+00> : vector<8x8xf32>
    %143 = tpu.matmul %139, %142, %cst_50 {dimension_numbers = #tpu.dot_dimension_numbers<[1], [0], [0], [1], [0, 0, 1, 1], [], []>} : vector<8x8xf32>, vector<8x8xf32>, vector<8x8xf32> -> vector<8x8xf32>
    %cst_51 = arith.constant dense<0xFF800000> : vector<8xf32>
    %144 = vector.multi_reduction <maximumf>, %143, %cst_51 [1] : vector<8x8xf32> to vector<8xf32>
    %145 = vector.shape_cast %144 : vector<8xf32> to vector<8x1xf32>
    %146 = vector.broadcast %145 : vector<8x1xf32> to vector<8x8xf32>
    %147 = arith.subf %143, %146 : vector<8x8xf32>
    %148 = math.exp %147 : vector<8x8xf32>
    %cst_52 = arith.constant dense<0.000000e+00> : vector<8xf32>
    %149 = vector.multi_reduction <add>, %148, %cst_52 [1] : vector<8x8xf32> to vector<8xf32>
    %150 = vector.shape_cast %149 : vector<8xf32> to vector<8x1xf32>
    %151 = tpu.reciprocal %150 : vector<8x1xf32> -> vector<8x1xf32>
    %152 = vector.broadcast %151 : vector<8x1xf32> to vector<8x8xf32>
    %153 = arith.mulf %148, %152 : vector<8x8xf32>
    %cst_53 = arith.constant dense<0.000000e+00> : vector<8x8xf32>
    %154 = tpu.matmul %153, %141, %cst_53 {dimension_numbers = #tpu.dot_dimension_numbers<[1], [0], [0], [1], [0, 0, 1, 1], [], []>} : vector<8x8xf32>, vector<8x8xf32>, vector<8x8xf32> -> vector<8x8xf32>
    %155 = vector.extract_strided_slice %2 {offsets = [16, 0], sizes = [8, 32], strides = [1, 1]} : vector<32x32xf32> to vector<8x32xf32>
    %cst_54 = arith.constant dense<0.000000e+00> : vector<8x32xf32>
    %156 = tpu.matmul %154, %155, %cst_54 {dimension_numbers = #tpu.dot_dimension_numbers<[1], [0], [0], [1], [0, 0, 1, 1], [], []>} : vector<8x8xf32>, vector<8x32xf32>, vector<8x32xf32> -> vector<8x32xf32>
    %157 = arith.addf %138, %156 : vector<8x32xf32>
    %158 = vector.extract_strided_slice %20 {offsets = [8, 24], sizes = [8, 8], strides = [1, 1]} : vector<16x32xf32> to vector<8x8xf32>
    %159 = vector.extract_strided_slice %21 {offsets = [8, 24], sizes = [8, 8], strides = [1, 1]} : vector<16x32xf32> to vector<8x8xf32>
    %160 = vector.extract_strided_slice %22 {offsets = [8, 24], sizes = [8, 8], strides = [1, 1]} : vector<16x32xf32> to vector<8x8xf32>
    %161 = tpu.transpose %159, [1, 0] : vector<8x8xf32> -> vector<8x8xf32>
    %cst_55 = arith.constant dense<0.000000e+00> : vector<8x8xf32>
    %162 = tpu.matmul %158, %161, %cst_55 {dimension_numbers = #tpu.dot_dimension_numbers<[1], [0], [0], [1], [0, 0, 1, 1], [], []>} : vector<8x8xf32>, vector<8x8xf32>, vector<8x8xf32> -> vector<8x8xf32>
    %cst_56 = arith.constant dense<0xFF800000> : vector<8xf32>
    %163 = vector.multi_reduction <maximumf>, %162, %cst_56 [1] : vector<8x8xf32> to vector<8xf32>
    %164 = vector.shape_cast %163 : vector<8xf32> to vector<8x1xf32>
    %165 = vector.broadcast %164 : vector<8x1xf32> to vector<8x8xf32>
    %166 = arith.subf %162, %165 : vector<8x8xf32>
    %167 = math.exp %166 : vector<8x8xf32>
    %cst_57 = arith.constant dense<0.000000e+00> : vector<8xf32>
    %168 = vector.multi_reduction <add>, %167, %cst_57 [1] : vector<8x8xf32> to vector<8xf32>
    %169 = vector.shape_cast %168 : vector<8xf32> to vector<8x1xf32>
    %170 = tpu.reciprocal %169 : vector<8x1xf32> -> vector<8x1xf32>
    %171 = vector.broadcast %170 : vector<8x1xf32> to vector<8x8xf32>
    %172 = arith.mulf %167, %171 : vector<8x8xf32>
    %cst_58 = arith.constant dense<0.000000e+00> : vector<8x8xf32>
    %173 = tpu.matmul %172, %160, %cst_58 {dimension_numbers = #tpu.dot_dimension_numbers<[1], [0], [0], [1], [0, 0, 1, 1], [], []>} : vector<8x8xf32>, vector<8x8xf32>, vector<8x8xf32> -> vector<8x8xf32>
    %174 = vector.extract_strided_slice %2 {offsets = [24, 0], sizes = [8, 32], strides = [1, 1]} : vector<32x32xf32> to vector<8x32xf32>
    %cst_59 = arith.constant dense<0.000000e+00> : vector<8x32xf32>
    %175 = tpu.matmul %173, %174, %cst_59 {dimension_numbers = #tpu.dot_dimension_numbers<[1], [0], [0], [1], [0, 0, 1, 1], [], []>} : vector<8x8xf32>, vector<8x32xf32>, vector<8x32xf32> -> vector<8x32xf32>
    %176 = arith.addf %157, %175 : vector<8x32xf32>
    %177 = tpu.concatenate %99, %176 in 0 : vector<8x32xf32>, vector<8x32xf32> -> vector<16x32xf32>
    %178 = vector.broadcast %7 : vector<1x32xf32> to vector<16x32xf32>
    %179 = arith.addf %177, %178 : vector<16x32xf32>
    %180 = arith.addf %0, %179 : vector<16x32xf32>
    %cst_60 = arith.constant dense<0.000000e+00> : vector<16xf32>
    %181 = vector.multi_reduction <add>, %180, %cst_60 [1] : vector<16x32xf32> to vector<16xf32>
    %182 = vector.shape_cast %181 : vector<16xf32> to vector<16x1xf32>
    %cst_61 = arith.constant 3.200000e+01 : f32
    %183 = vector.broadcast %cst_61 : f32 to vector<16x1xf32>
    %184 = arith.divf %182, %183 : vector<16x1xf32>
    %185 = vector.broadcast %184 : vector<16x1xf32> to vector<16x32xf32>
    %186 = arith.subf %180, %185 : vector<16x32xf32>
    %187 = arith.mulf %186, %186 : vector<16x32xf32>
    %cst_62 = arith.constant dense<0.000000e+00> : vector<16xf32>
    %188 = vector.multi_reduction <add>, %187, %cst_62 [1] : vector<16x32xf32> to vector<16xf32>
    %189 = vector.shape_cast %188 : vector<16xf32> to vector<16x1xf32>
    %cst_63 = arith.constant 3.200000e+01 : f32
    %190 = vector.broadcast %cst_63 : f32 to vector<16x1xf32>
    %191 = arith.divf %189, %190 : vector<16x1xf32>
    %192 = vector.broadcast %184 : vector<16x1xf32> to vector<16x32xf32>
    %193 = arith.subf %180, %192 : vector<16x32xf32>
    %cst_64 = arith.constant 9.99999974E-6 : f32
    %194 = vector.broadcast %cst_64 : f32 to vector<16x1xf32>
    %195 = arith.addf %191, %194 : vector<16x1xf32>
    %196 = math.rsqrt %195 : vector<16x1xf32>
    %197 = vector.broadcast %196 : vector<16x1xf32> to vector<16x32xf32>
    %198 = arith.mulf %193, %197 : vector<16x32xf32>
    %199 = vector.broadcast %8 : vector<1x32xf32> to vector<16x32xf32>
    %200 = arith.mulf %198, %199 : vector<16x32xf32>
    %201 = vector.broadcast %9 : vector<1x32xf32> to vector<16x32xf32>
    %202 = arith.addf %200, %201 : vector<16x32xf32>
    %cst_65 = arith.constant dense<0.000000e+00> : vector<16x64xf32>
    %203 = tpu.matmul %202, %3, %cst_65 {dimension_numbers = #tpu.dot_dimension_numbers<[1], [0], [0], [1], [0, 0, 1, 1], [], []>} : vector<16x32xf32>, vector<32x64xf32>, vector<16x64xf32> -> vector<16x64xf32>
    %204 = vector.broadcast %10 : vector<1x64xf32> to vector<16x64xf32>
    %205 = arith.addf %203, %204 : vector<16x64xf32>
    %cst_66 = arith.constant 0.000000e+00 : f32
    %206 = vector.broadcast %cst_66 : f32 to vector<16x64xf32>
    %207 = arith.maximumf %205, %206 : vector<16x64xf32>
    %cst_67 = arith.constant dense<0.000000e+00> : vector<16x32xf32>
    %208 = tpu.matmul %207, %4, %cst_67 {dimension_numbers = #tpu.dot_dimension_numbers<[1], [0], [0], [1], [0, 0, 1, 1], [], []>} : vector<16x64xf32>, vector<64x32xf32>, vector<16x32xf32> -> vector<16x32xf32>
    %209 = vector.broadcast %11 : vector<1x32xf32> to vector<16x32xf32>
    %210 = arith.addf %208, %209 : vector<16x32xf32>
    %211 = arith.addf %202, %210 : vector<16x32xf32>
    %cst_68 = arith.constant dense<0.000000e+00> : vector<16xf32>
    %212 = vector.multi_reduction <add>, %211, %cst_68 [1] : vector<16x32xf32> to vector<16xf32>
    %213 = vector.shape_cast %212 : vector<16xf32> to vector<16x1xf32>
    %cst_69 = arith.constant 3.200000e+01 : f32
    %214 = vector.broadcast %cst_69 : f32 to vector<16x1xf32>
    %215 = arith.divf %213, %214 : vector<16x1xf32>
    %216 = vector.broadcast %215 : vector<16x1xf32> to vector<16x32xf32>
    %217 = arith.subf %211, %216 : vector<16x32xf32>
    %218 = arith.mulf %217, %217 : vector<16x32xf32>
    %cst_70 = arith.constant dense<0.000000e+00> : vector<16xf32>
    %219 = vector.multi_reduction <add>, %218, %cst_70 [1] : vector<16x32xf32> to vector<16xf32>
    %220 = vector.shape_cast %219 : vector<16xf32> to vector<16x1xf32>
    %cst_71 = arith.constant 3.200000e+01 : f32
    %221 = vector.broadcast %cst_71 : f32 to vector<16x1xf32>
    %222 = arith.divf %220, %221 : vector<16x1xf32>
    %223 = vector.broadcast %215 : vector<16x1xf32> to vector<16x32xf32>
    %224 = arith.subf %211, %223 : vector<16x32xf32>
    %cst_72 = arith.constant 9.99999974E-6 : f32
    %225 = vector.broadcast %cst_72 : f32 to vector<16x1xf32>
    %226 = arith.addf %222, %225 : vector<16x1xf32>
    %227 = math.rsqrt %226 : vector<16x1xf32>
    %228 = vector.broadcast %227 : vector<16x1xf32> to vector<16x32xf32>
    %229 = arith.mulf %224, %228 : vector<16x32xf32>
    %230 = vector.broadcast %12 : vector<1x32xf32> to vector<16x32xf32>
    %231 = arith.mulf %229, %230 : vector<16x32xf32>
    %232 = vector.broadcast %13 : vector<1x32xf32> to vector<16x32xf32>
    %233 = arith.addf %231, %232 : vector<16x32xf32>
    %cst_73 = arith.constant dense<0.000000e+00> : vector<16x128xf32>
    %234 = tpu.matmul %233, %5, %cst_73 {dimension_numbers = #tpu.dot_dimension_numbers<[1], [0], [0], [1], [0, 0, 1, 1], [], []>} : vector<16x32xf32>, vector<32x128xf32>, vector<16x128xf32> -> vector<16x128xf32>
    %235 = vector.broadcast %14 : vector<1x128xf32> to vector<16x128xf32>
    %236 = arith.addf %234, %235 : vector<16x128xf32>
    %c0_74 = arith.constant 0 : index
    %c0_75 = arith.constant 0 : index
    %237 = vector.load %arg4[%c0_74, %c0_75] : memref<16x128xf32, #tpu.memory_space<vmem>>, vector<16x128xf32>
    tpu.vector_store %arg4[%c0_74, %c0_75], %236 {strides = array<i32>} : memref<16x128xf32, #tpu.memory_space<vmem>>, vector<16x128xf32>,
    return
  }
  func.func @transform_0(%arg0: i32) -> (i32, i32) {
    %c0_i32 = arith.constant 0 : i32
    %c0_i32_0 = arith.constant 0 : i32
    %c0_i32_1 = arith.constant 0 : i32
    return %c0_i32, %c0_i32_0 : i32, i32
  }
  func.func @transform_1(%arg0: i32) -> (i32, i32) {
    %c0_i32 = arith.constant 0 : i32
    %c0_i32_0 = arith.constant 0 : i32
    %c0_i32_1 = arith.constant 0 : i32
    return %c0_i32, %c0_i32_0 : i32, i32
  }
  func.func @transform_2(%arg0: i32) -> (i32, i32) {
    %c0_i32 = arith.constant 0 : i32
    %c0_i32_0 = arith.constant 0 : i32
    %c0_i32_1 = arith.constant 0 : i32
    return %c0_i32, %c0_i32_0 : i32, i32
  }
  func.func @transform_3(%arg0: i32) -> (i32, i32) {
    %c0_i32 = arith.constant 0 : i32
    %c0_i32_0 = arith.constant 0 : i32
    %c0_i32_1 = arith.constant 0 : i32
    return %c0_i32, %c0_i32_0 : i32, i32
  }
}

</mosaic_0001>

<llo_original>
// kernel: tpu_custom_call.1
$region0: #{tpu_custom_call.1}
  #allocation0 [shape = 'u32[]', space=smem, size = 0x4, offset = 0x4, fixed_abs, tag = 'smem constant byte address 0x4 - core index']
  #allocation1 [shape = 'u32[144,128]{1,0:T(1,128)}', space=vmem, size = 0x12000, scoped, tag = 'internal scratch']
  %s0 = inlined_call_operand.hbm [shape: f32[16,32], index: 0, kind: input, shape index: {}]
  %s1 = inlined_call_operand.hbm [shape: f32[192,128], index: 1, kind: input, shape index: {}]
  %s2 = inlined_call_operand.hbm [shape: f32[16,128], index: 2, kind: input, shape index: {}]
  %s3 = inlined_call_operand.hbm [shape: f32[16,128], index: 3, kind: output, shape index: {}]
  %s4 = sld [smem:[#allocation0]]
  $region34: #{tpu_custom_call.1} parent=0
    _
  %s6 = ssub.s32 1, %s4
  %s7 = scalar_select 0, %s6, %s4
  $region1: #{tpu_custom_call.1} parent=0
    #allocation2 [shape = 'u8[8192]{0}', space=vmem, size = 0x2000, scoped, tag = 'input window, operand 0, single buffered']
    #allocation3 [shape = 's32[1]{0}', space=sflag, size = 0x4, scoped, tag = 'scoped memory for tpu_custom_call.1']
    #allocation4 [shape = 's32[1]{0}', space=sflag, size = 0x4, scoped, tag = 'scoped memory for tpu_custom_call.1']
    #allocation5 [shape = 'u8[98304]{0}', space=vmem, size = 0x18000, scoped, tag = 'input window, operand 1, single buffered']
    #allocation6 [shape = 's32[1]{0}', space=sflag, size = 0x4, scoped, tag = 'scoped memory for tpu_custom_call.1']
    #allocation7 [shape = 'u8[8192]{0}', space=vmem, size = 0x2000, scoped, tag = 'input window, operand 2, single buffered']
    #allocation8 [shape = 'u8[8192]{0}', space=vmem, size = 0x2000, scoped, tag = 'output window, operand 0, single buffered']
    %8 = vsyncpa [#allocation3], 0
    %9 = vsyncpa [#allocation6], 0
    %10 = vsyncpa [#allocation4], 0
    // Predicated region
    $region2: #{tpu_custom_call.1} parent=1 // pred_check
      _
    $region3: #{tpu_custom_call.1} parent=1 // pred_check_branch
      %12 = sbr.rel (0) target = $region5
    $region4: #{tpu_custom_call.1} parent=1 // pred_region
      %s14 = ssub.s32 256, 256
      %15 = vsyncadd [#allocation3], %s14
      %s16 = sshll.u32 [#allocation2], 4
      %s17 = int_to_ptr.vmem [resolvable:$true] %s16
      %22 = dma.hbm_to_vmem [thread:$0]  %s0, 256, %s17, [#allocation3], 128, 128, 8
    $region5: #{tpu_custom_call.1} parent=1 // pred_fallthru
      _
    // Predicated region
    $region6: #{tpu_custom_call.1} parent=1 // pred_check
      _
    $region7: #{tpu_custom_call.1} parent=1 // pred_check_branch
      %24 = sbr.rel (0) target = $region9
    $region8: #{tpu_custom_call.1} parent=1 // pred_region
      %s26 = ssub.s32 3072, 3072
      %27 = vsyncadd [#allocation6], %s26
      %s28 = sshll.u32 [#allocation5], 4
      %s29 = int_to_ptr.vmem [resolvable:$true] %s28
      %34 = dma.hbm_to_vmem [thread:$0]  %s1, 3072, %s29, [#allocation6], 128, 128, 8
    $region9: #{tpu_custom_call.1} parent=1 // pred_fallthru
      _
    // Predicated region
    $region10: #{tpu_custom_call.1} parent=1 // pred_check
      _
    $region11: #{tpu_custom_call.1} parent=1 // pred_check_branch
      %36 = sbr.rel (0) target = $region13
    $region12: #{tpu_custom_call.1} parent=1 // pred_region
      %s38 = ssub.s32 256, 256
      %39 = vsyncadd [#allocation6], %s38
      %s40 = sshll.u32 [#allocation7], 4
      %s41 = int_to_ptr.vmem [resolvable:$true] %s40
      %46 = dma.hbm_to_vmem [thread:$0]  %s2, 256, %s41, [#allocation6], 128, 128, 8
    $region13: #{tpu_custom_call.1} parent=1 // pred_fallthru
      _
    // Predicated region
    $region14: #{tpu_custom_call.1} parent=1 // pred_check
      _
    $region15: #{tpu_custom_call.1} parent=1 // pred_check_branch
      %48 = sbr.rel (0) target = $region17
    $region16: #{tpu_custom_call.1} parent=1 // pred_region
      %49 = dma.done [#allocation3], 256
    $region17: #{tpu_custom_call.1} parent=1 // pred_fallthru
      _
    // Predicated region
    $region18: #{tpu_custom_call.1} parent=1 // pred_check
      _
    $region19: #{tpu_custom_call.1} parent=1 // pred_check_branch
      %51 = sbr.rel (0) target = $region21
    $region20: #{tpu_custom_call.1} parent=1 // pred_region
      %52 = dma.done [#allocation6], 3072
    $region21: #{tpu_custom_call.1} parent=1 // pred_fallthru
      _
    // Predicated region
    $region22: #{tpu_custom_call.1} parent=1 // pred_check
      _
    $region23: #{tpu_custom_call.1} parent=1 // pred_check_branch
      %54 = sbr.rel (0) target = $region25
    $region24: #{tpu_custom_call.1} parent=1 // pred_region
      %55 = dma.done [#allocation6], 256
    $region25: #{tpu_custom_call.1} parent=1 // pred_fallthru
      _
    %v56 = vld [vmem:[#allocation2] sm:$0xff]
    %v57 = vld [vmem:[#allocation2 + $0x8] sm:$0xff]
    %v58 = vld [vmem:[#allocation5] sm:$0xff]
    %v59 = vld [vmem:[#allocation5 + $0x8] sm:$0xff]
    %v60 = vld [vmem:[#allocation5 + $0x10] sm:$0xff]
    %v61 = vld [vmem:[#allocation5 + $0x18] sm:$0xff]
    %v62 = vld [vmem:[#allocation5 + $0x20] sm:$0xff]
    %v63 = vld [vmem:[#allocation5 + $0x28] sm:$0xff]
    %v64 = vld [vmem:[#allocation5 + $0x30] sm:$0xff]
    %v65 = vld [vmem:[#allocation5 + $0x38] sm:$0xff]
    %v66 = vld [vmem:[#allocation5 + $0x40] sm:$0xff]
    %v67 = vld [vmem:[#allocation5 + $0x48] sm:$0xff]
    %v68 = vld [vmem:[#allocation5 + $0x50] sm:$0xff]
    %v69 = vld [vmem:[#allocation5 + $0x58] sm:$0xff]
    %v70 = vld [vmem:[#allocation5 + $0x60] sm:$0xff]
    %v71 = vld [vmem:[#allocation5 + $0x68] sm:$0xff]
    %v72 = vld [vmem:[#allocation5 + $0x70] sm:$0xff]
    %v73 = vld [vmem:[#allocation5 + $0x78] sm:$0xff]
    %v74 = vld [vmem:[#allocation5 + $0x80] sm:$0xff]
    %v75 = vld [vmem:[#allocation5 + $0x88] sm:$0xff]
    %v76 = vld [vmem:[#allocation5 + $0x90] sm:$0xff]
    %v77 = vld [vmem:[#allocation5 + $0x98] sm:$0xff]
    %v78 = vld [vmem:[#allocation5 + $0xa0] sm:$0xff]
    %v79 = vld [vmem:[#allocation5 + $0xa8] sm:$0xff]
    %v80 = vld [vmem:[#allocation5 + $0xb0] sm:$0xff]
    %v81 = vld [vmem:[#allocation5 + $0xb8] sm:$0xff]
    %v82 = vld [vmem:[#allocation7] sm:$0x1]
    %v83 = vld [vmem:[#allocation7 + $0x1] sm:$0x1]
    %v84 = vld [vmem:[#allocation7 + $0x2] sm:$0x1]
    %v85 = vld [vmem:[#allocation7 + $0x3] sm:$0x1]
    %v86 = vld [vmem:[#allocation7 + $0x4] sm:$0x1]
    %v87 = vld [vmem:[#allocation7 + $0x5] sm:$0x1]
    %v88 = vld [vmem:[#allocation7 + $0x6] sm:$0x1]
    %v89 = vld [vmem:[#allocation7 + $0x7] sm:$0x1]
    %v90 = vld [vmem:[#allocation7 + $0x8] sm:$0x1]
    %v91 = vlaneseq
    %v92 = vshrl.u32 %v91, 7
    %v93 = vsub.s32 0, %v92
    %v94 = vrot.slane %v82, %v93
    %vm95 = vcmask 261120
    %v97 = vsel %vm95, %v56, 0
    %v100 = vsel %vm95, %v57, 0
    %102 = vmatprep.subr.mxu0 0.0
    %103 = vmatpush1.msra.mxu0 %v58
    %104 = vmatprep.subr.mxu0 0.0
    %105 = vmatpush1.msra.mxu0 %v59
    %106 = vmatprep.subr.mxu0 0.0
    %107 = vmatpush1.msra.mxu0 %v60
    %108 = vmatprep.subr.mxu0 0.0
    %109 = vmatpush1.msra.mxu0 %v61
    %110 = vmatprep.subr.mxu0 0.0
    %111 = vmatpush1.msra.mxu0 0.0
    %112 = vmatprep.subr.mxu0 0.0
    %113 = vmatpush1.msra.mxu0 0.0
    %114 = vmatprep.subr.mxu0 0.0
    %115 = vmatpush1.msra.mxu0 0.0
    %116 = vmatprep.subr.mxu0 0.0
    %117 = vmatpush1.msra.mxu0 0.0
    %118 = vmatprep.subr.mxu0 0.0
    %119 = vmatpush1.msra.mxu0 0.0
    %120 = vmatprep.subr.mxu0 0.0
    %121 = vmatpush1.msra.mxu0 0.0
    %122 = vmatprep.subr.mxu0 0.0
    %123 = vmatpush1.msra.mxu0 0.0
    %124 = vmatprep.subr.mxu0 0.0
    %125 = vmatpush1.msra.mxu0 0.0
    %126 = vmatprep.subr.mxu0 0.0
    %127 = vmatpush1.msra.mxu0 0.0
    %128 = vmatprep.subr.mxu0 0.0
    %129 = vmatpush1.msra.mxu0 0.0
    %130 = vmatprep.subr.mxu0 0.0
    %131 = vmatpush1.msra.mxu0 0.0
    %132 = vmatprep.subr.mxu0 0.0
    %133 = vmatpush1.msra.mxu0 0.0
    %134 = vmatprep.subr.mxu0 0.0
    %135 = vmatpush1.msra.mxu0 0.0
    %136 = vmatprep.subr.mxu0 0.0
    %137 = vmatpush1.msra.mxu0 0.0
    %138 = vmatprep.subr.mxu0 0.0
    %139 = vmatpush1.msra.mxu0 0.0
    %140 = vmatprep.subr.mxu0 0.0
    %141 = vmatpush1.msra.mxu0 0.0
    %142 = vmatprep.subr.mxu0 0.0
    %143 = vmatpush1.msra.mxu0 0.0
    %144 = vmatprep.subr.mxu0 0.0
    %145 = vmatpush1.msra.mxu0 0.0
    %146 = vmatprep.subr.mxu0 0.0
    %147 = vmatpush1.msra.mxu0 0.0
    %148 = vmatprep.subr.mxu0 0.0
    %149 = vmatpush1.msra.mxu0 0.0
    %150 = vmatprep.subr.mxu0 0.0
    %151 = vmatpush1.msra.mxu0 0.0
    %152 = vmatprep.subr.mxu0 0.0
    %153 = vmatpush1.msra.mxu0 0.0
    %154 = vmatprep.subr.mxu0 0.0
    %155 = vmatpush1.msra.mxu0 0.0
    %156 = vmatprep.subr.mxu0 0.0
    %157 = vmatpush1.msra.mxu0 0.0
    %158 = vmatprep.subr.mxu0 0.0
    %159 = vmatpush1.msra.mxu0 0.0
    %160 = vmatprep.subr.mxu0 0.0
    %161 = vmatpush1.msra.mxu0 0.0
    %162 = vmatprep.subr.mxu0 0.0
    %163 = vmatpush1.msra.mxu0 0.0
    %164 = vmatprep.subr.mxu0 0.0
    %165 = vmatpush1.msra.mxu0 0.0
    %166 = vmatprep.mubr.f32.mxu0 0.0
    %167 = vmatmul.mubr.f32.gmra.mrb[0].mxu0 %v97
    %v168 = vpop.f32.mrb[0].mxu0
    %v169 = vadd.f32 %v94, %v168
    %v170 = vpop.f32.mrb[0].mxu0
    %171 = vmatprep.mubr.f32.mxu0 0.0
    %172 = vmatmul.mubr.f32.gmra.mrb[0].mxu0 %v100
    %v173 = vpop.f32.mrb[0].mxu0
    %v174 = vadd.f32 %v94, %v173
    %v175 = vpop.f32.mrb[0].mxu0
    %176 = vdwg.mxu0
    %v177 = vmul.f32 %v169, 0.35355338
    %v178 = vmul.f32 %v174, 0.35355338
    %180 = vrot.lane.b32.xlu0 %v169, 96
    %v181 = vpop.permute.xlu0 %180
    %vm182 = vcmask 64512
    %v184 = vsel %vm182, %v177, 0
    %v186 = vsel %vm182, %v181, 0
    %188 = vmatprep.subr.mxu0 0.0
    %189 = vmatpush1.xpose.msra.mxu0 %v186
    %190 = vmatprep.subr.mxu0 0.0
    %191 = vmatpush1.xpose.msra.mxu0 0.0
    %192 = vmatprep.subr.mxu0 0.0
    %193 = vmatpush1.xpose.msra.mxu0 0.0
    %194 = vmatprep.subr.mxu0 0.0
    %195 = vmatpush1.xpose.msra.mxu0 0.0
    %196 = vmatprep.subr.mxu0 0.0
    %197 = vmatpush1.xpose.msra.mxu0 0.0
    %198 = vmatprep.subr.mxu0 0.0
    %199 = vmatpush1.xpose.msra.mxu0 0.0
    %200 = vmatprep.subr.mxu0 0.0
    %201 = vmatpush1.xpose.msra.mxu0 0.0
    %202 = vmatprep.subr.mxu0 0.0
    %203 = vmatpush1.xpose.msra.mxu0 0.0
    %204 = vmatprep.subr.mxu0 0.0
    %205 = vmatpush1.xpose.msra.mxu0 0.0
    %206 = vmatprep.subr.mxu0 0.0
    %207 = vmatpush1.xpose.msra.mxu0 0.0
    %208 = vmatprep.subr.mxu0 0.0
    %209 = vmatpush1.xpose.msra.mxu0 0.0
    %210 = vmatprep.subr.mxu0 0.0
    %211 = vmatpush1.xpose.msra.mxu0 0.0
    %212 = vmatprep.subr.mxu0 0.0
    %213 = vmatpush1.xpose.msra.mxu0 0.0
    %214 = vmatprep.subr.mxu0 0.0
    %215 = vmatpush1.xpose.msra.mxu0 0.0
    %216 = vmatprep.subr.mxu0 0.0
    %217 = vmatpush1.xpose.msra.mxu0 0.0
    %218 = vmatprep.subr.mxu0 0.0
    %219 = vmatpush1.xpose.msra.mxu0 0.0
    %220 = vmatprep.subr.mxu0 0.0
    %221 = vmatpush1.xpose.msra.mxu0 0.0
    %222 = vmatprep.subr.mxu0 0.0
    %223 = vmatpush1.xpose.msra.mxu0 0.0
    %224 = vmatprep.subr.mxu0 0.0
    %225 = vmatpush1.xpose.msra.mxu0 0.0
    %226 = vmatprep.subr.mxu0 0.0
    %227 = vmatpush1.xpose.msra.mxu0 0.0
    %228 = vmatprep.subr.mxu0 0.0
    %229 = vmatpush1.xpose.msra.mxu0 0.0
    %230 = vmatprep.subr.mxu0 0.0
    %231 = vmatpush1.xpose.msra.mxu0 0.0
    %232 = vmatprep.subr.mxu0 0.0
    %233 = vmatpush1.xpose.msra.mxu0 0.0
    %234 = vmatprep.subr.mxu0 0.0
    %235 = vmatpush1.xpose.msra.mxu0 0.0
    %236 = vmatprep.subr.mxu0 0.0
    %237 = vmatpush1.xpose.msra.mxu0 0.0
    %238 = vmatprep.subr.mxu0 0.0
    %239 = vmatpush1.xpose.msra.mxu0 0.0
    %240 = vmatprep.subr.mxu0 0.0
    %241 = vmatpush1.xpose.msra.mxu0 0.0
    %242 = vmatprep.subr.mxu0 0.0
    %243 = vmatpush1.xpose.msra.mxu0 0.0
    %244 = vmatprep.subr.mxu0 0.0
    %245 = vmatpush1.xpose.msra.mxu0 0.0
    %246 = vmatprep.subr.mxu0 0.0
    %247 = vmatpush1.xpose.msra.mxu0 0.0
    %248 = vmatprep.subr.mxu0 0.0
    %249 = vmatpush1.xpose.msra.mxu0 0.0
    %250 = vmatprep.subr.mxu0 0.0
    %251 = vmatpush1.xpose.msra.mxu0 0.0
    %252 = vmatprep.mubr.f32.mxu0 0.0
    %253 = vmatmul.mubr.f32.gmra.mrb[0].mxu0 %v184
    %v254 = vpop.f32.mrb[0].mxu0
    %v255 = vadd.f32 0.0, %v254
    %v256 = vpop.f32.mrb[0].mxu0
    %257 = vdwg.mxu0
    %v258 = vsel %vm182, %v255, -inf
    %259 = vmax.xlane.f32.xlu0 %v258
    %v260 = vpop.xlane.xlu0 %259
    %v261 = vsub.f32 %v255, %v260
    %v262 = vmul.f32 %v261, 1.442695
    %v263 = vpow.pop %v262
    %v264 = vsel %vm182, %v263, 0.0
    %265 = vadd.xlane.f32.xlu0 %v264
    %v266 = vpop.xlane.xlu0 %265
    %v267 = vrcp.pop %v266
    %v268 = vmul.f32 %v263, %v267
    %269 = vrot.lane.b32.xlu0 %v169, 64
    %v270 = vpop.permute.xlu0 %269
    %v273 = vsel %vm182, %v268, 0
    %275 = vmatprep.subr.mxu0 0.0
    %276 = vmatpush1.msra.mxu0 %v270
    %277 = vmatprep.subr.mxu0 0.0
    %278 = vmatpush1.msra.mxu0 0.0
    %279 = vmatprep.subr.mxu0 0.0
    %280 = vmatpush1.msra.mxu0 0.0
    %281 = vmatprep.subr.mxu0 0.0
    %282 = vmatpush1.msra.mxu0 0.0
    %283 = vmatprep.subr.mxu0 0.0
    %284 = vmatpush1.msra.mxu0 0.0
    %285 = vmatprep.subr.mxu0 0.0
    %286 = vmatpush1.msra.mxu0 0.0
    %287 = vmatprep.subr.mxu0 0.0
    %288 = vmatpush1.msra.mxu0 0.0
    %289 = vmatprep.subr.mxu0 0.0
    %290 = vmatpush1.msra.mxu0 0.0
    %291 = vmatprep.subr.mxu0 0.0
    %292 = vmatpush1.msra.mxu0 0.0
    %293 = vmatprep.subr.mxu0 0.0
    %294 = vmatpush1.msra.mxu0 0.0
    %295 = vmatprep.subr.mxu0 0.0
    %296 = vmatpush1.msra.mxu0 0.0
    %297 = vmatprep.subr.mxu0 0.0
    %298 = vmatpush1.msra.mxu0 0.0
    %299 = vmatprep.subr.mxu0 0.0
    %300 = vmatpush1.msra.mxu0 0.0
    %301 = vmatprep.subr.mxu0 0.0
    %302 = vmatpush1.msra.mxu0 0.0
    %303 = vmatprep.subr.mxu0 0.0
    %304 = vmatpush1.msra.mxu0 0.0
    %305 = vmatprep.subr.mxu0 0.0
    %306 = vmatpush1.msra.mxu0 0.0
    %307 = vmatprep.subr.mxu0 0.0
    %308 = vmatpush1.msra.mxu0 0.0
    %309 = vmatprep.subr.mxu0 0.0
    %310 = vmatpush1.msra.mxu0 0.0
    %311 = vmatprep.subr.mxu0 0.0
    %312 = vmatpush1.msra.mxu0 0.0
    %313 = vmatprep.subr.mxu0 0.0
    %314 = vmatpush1.msra.mxu0 0.0
    %315 = vmatprep.subr.mxu0 0.0
    %316 = vmatpush1.msra.mxu0 0.0
    %317 = vmatprep.subr.mxu0 0.0
    %318 = vmatpush1.msra.mxu0 0.0
    %319 = vmatprep.subr.mxu0 0.0
    %320 = vmatpush1.msra.mxu0 0.0
    %321 = vmatprep.subr.mxu0 0.0
    %322 = vmatpush1.msra.mxu0 0.0
    %323 = vmatprep.subr.mxu0 0.0
    %324 = vmatpush1.msra.mxu0 0.0
    %325 = vmatprep.subr.mxu0 0.0
    %326 = vmatpush1.msra.mxu0 0.0
    %327 = vmatprep.subr.mxu0 0.0
    %328 = vmatpush1.msra.mxu0 0.0
    %329 = vmatprep.subr.mxu0 0.0
    %330 = vmatpush1.msra.mxu0 0.0
    %331 = vmatprep.subr.mxu0 0.0
    %332 = vmatpush1.msra.mxu0 0.0
    %333 = vmatprep.subr.mxu0 0.0
    %334 = vmatpush1.msra.mxu0 0.0
    %335 = vmatprep.subr.mxu0 0.0
    %336 = vmatpush1.msra.mxu0 0.0
    %337 = vmatprep.subr.mxu0 0.0
    %338 = vmatpush1.msra.mxu0 0.0
    %339 = vmatprep.mubr.f32.mxu0 0.0
    %340 = vmatmul.mubr.f32.gmra.mrb[0].mxu0 %v273
    %v341 = vpop.f32.mrb[0].mxu0
    %v342 = vadd.f32 0.0, %v341
    %v343 = vpop.f32.mrb[0].mxu0
    %344 = vdwg.mxu0
    %345 = vrot.lane.b32.xlu0 %v177, 120
    %v346 = vpop.permute.xlu0 %345
    %347 = vrot.lane.b32.xlu0 %v169, 88
    %v348 = vpop.permute.xlu0 %347
    %v349 = vsel %vm182, %v346, 0
    %v351 = vsel %vm182, %v348, 0
    %353 = vmatprep.subr.mxu0 0.0
    %354 = vmatpush1.xpose.msra.mxu0 %v351
    %355 = vmatprep.subr.mxu0 0.0
    %356 = vmatpush1.xpose.msra.mxu0 0.0
    %357 = vmatprep.subr.mxu0 0.0
    %358 = vmatpush1.xpose.msra.mxu0 0.0
    %359 = vmatprep.subr.mxu0 0.0
    %360 = vmatpush1.xpose.msra.mxu0 0.0
    %361 = vmatprep.subr.mxu0 0.0
    %362 = vmatpush1.xpose.msra.mxu0 0.0
    %363 = vmatprep.subr.mxu0 0.0
    %364 = vmatpush1.xpose.msra.mxu0 0.0
    %365 = vmatprep.subr.mxu0 0.0
    %366 = vmatpush1.xpose.msra.mxu0 0.0
    %367 = vmatprep.subr.mxu0 0.0
    %368 = vmatpush1.xpose.msra.mxu0 0.0
    %369 = vmatprep.subr.mxu0 0.0
    %370 = vmatpush1.xpose.msra.mxu0 0.0
    %371 = vmatprep.subr.mxu0 0.0
    %372 = vmatpush1.xpose.msra.mxu0 0.0
    %373 = vmatprep.subr.mxu0 0.0
    %374 = vmatpush1.xpose.msra.mxu0 0.0
    %375 = vmatprep.subr.mxu0 0.0
    %376 = vmatpush1.xpose.msra.mxu0 0.0
    %377 = vmatprep.subr.mxu0 0.0
    %378 = vmatpush1.xpose.msra.mxu0 0.0
    %379 = vmatprep.subr.mxu0 0.0
    %380 = vmatpush1.xpose.msra.mxu0 0.0
    %381 = vmatprep.subr.mxu0 0.0
    %382 = vmatpush1.xpose.msra.mxu0 0.0
    %383 = vmatprep.subr.mxu0 0.0
    %384 = vmatpush1.xpose.msra.mxu0 0.0
    %385 = vmatprep.subr.mxu0 0.0
    %386 = vmatpush1.xpose.msra.mxu0 0.0
    %387 = vmatprep.subr.mxu0 0.0
    %388 = vmatpush1.xpose.msra.mxu0 0.0
    %389 = vmatprep.subr.mxu0 0.0
    %390 = vmatpush1.xpose.msra.mxu0 0.0
    %391 = vmatprep.subr.mxu0 0.0
    %392 = vmatpush1.xpose.msra.mxu0 0.0
    %393 = vmatprep.subr.mxu0 0.0
    %394 = vmatpush1.xpose.msra.mxu0 0.0
    %395 = vmatprep.subr.mxu0 0.0
    %396 = vmatpush1.xpose.msra.mxu0 0.0
    %397 = vmatprep.subr.mxu0 0.0
    %398 = vmatpush1.xpose.msra.mxu0 0.0
    %399 = vmatprep.subr.mxu0 0.0
    %400 = vmatpush1.xpose.msra.mxu0 0.0
    %401 = vmatprep.subr.mxu0 0.0
    %402 = vmatpush1.xpose.msra.mxu0 0.0
    %403 = vmatprep.subr.mxu0 0.0
    %404 = vmatpush1.xpose.msra.mxu0 0.0
    %405 = vmatprep.subr.mxu0 0.0
    %406 = vmatpush1.xpose.msra.mxu0 0.0
    %407 = vmatprep.subr.mxu0 0.0
    %408 = vmatpush1.xpose.msra.mxu0 0.0
    %409 = vmatprep.subr.mxu0 0.0
    %410 = vmatpush1.xpose.msra.mxu0 0.0
    %411 = vmatprep.subr.mxu0 0.0
    %412 = vmatpush1.xpose.msra.mxu0 0.0
    %413 = vmatprep.subr.mxu0 0.0
    %414 = vmatpush1.xpose.msra.mxu0 0.0
    %415 = vmatprep.subr.mxu0 0.0
    %416 = vmatpush1.xpose.msra.mxu0 0.0
    %417 = vmatprep.mubr.f32.mxu0 0.0
    %418 = vmatmul.mubr.f32.gmra.mrb[0].mxu0 %v349
    %v419 = vpop.f32.mrb[0].mxu0
    %v420 = vadd.f32 0.0, %v419
    %v421 = vpop.f32.mrb[0].mxu0
    %422 = vdwg.mxu0
    %v423 = vsel %vm182, %v420, -inf
    %424 = vmax.xlane.f32.xlu0 %v423
    %v425 = vpop.xlane.xlu0 %424
    %v426 = vsub.f32 %v420, %v425
    %v427 = vmul.f32 %v426, 1.442695
    %v428 = vpow.pop %v427
    %v429 = vsel %vm182, %v428, 0.0
    %430 = vadd.xlane.f32.xlu0 %v429
    %v431 = vpop.xlane.xlu0 %430
    %v432 = vrcp.pop %v431
    %v433 = vmul.f32 %v428, %v432
    %434 = vrot.lane.b32.xlu0 %v169, 56
    %v435 = vpop.permute.xlu0 %434
    %v438 = vsel %vm182, %v433, 0
    %440 = vmatprep.subr.mxu0 0.0
    %441 = vmatpush1.msra.mxu0 %v435
    %442 = vmatprep.subr.mxu0 0.0
    %443 = vmatpush1.msra.mxu0 0.0
    %444 = vmatprep.subr.mxu0 0.0
    %445 = vmatpush1.msra.mxu0 0.0
    %446 = vmatprep.subr.mxu0 0.0
    %447 = vmatpush1.msra.mxu0 0.0
    %448 = vmatprep.subr.mxu0 0.0
    %449 = vmatpush1.msra.mxu0 0.0
    %450 = vmatprep.subr.mxu0 0.0
    %451 = vmatpush1.msra.mxu0 0.0
    %452 = vmatprep.subr.mxu0 0.0
    %453 = vmatpush1.msra.mxu0 0.0
    %454 = vmatprep.subr.mxu0 0.0
    %455 = vmatpush1.msra.mxu0 0.0
    %456 = vmatprep.subr.mxu0 0.0
    %457 = vmatpush1.msra.mxu0 0.0
    %458 = vmatprep.subr.mxu0 0.0
    %459 = vmatpush1.msra.mxu0 0.0
    %460 = vmatprep.subr.mxu0 0.0
    %461 = vmatpush1.msra.mxu0 0.0
    %462 = vmatprep.subr.mxu0 0.0
    %463 = vmatpush1.msra.mxu0 0.0
    %464 = vmatprep.subr.mxu0 0.0
    %465 = vmatpush1.msra.mxu0 0.0
    %466 = vmatprep.subr.mxu0 0.0
    %467 = vmatpush1.msra.mxu0 0.0
    %468 = vmatprep.subr.mxu0 0.0
    %469 = vmatpush1.msra.mxu0 0.0
    %470 = vmatprep.subr.mxu0 0.0
    %471 = vmatpush1.msra.mxu0 0.0
    %472 = vmatprep.subr.mxu0 0.0
    %473 = vmatpush1.msra.mxu0 0.0
    %474 = vmatprep.subr.mxu0 0.0
    %475 = vmatpush1.msra.mxu0 0.0
    %476 = vmatprep.subr.mxu0 0.0
    %477 = vmatpush1.msra.mxu0 0.0
    %478 = vmatprep.subr.mxu0 0.0
    %479 = vmatpush1.msra.mxu0 0.0
    %480 = vmatprep.subr.mxu0 0.0
    %481 = vmatpush1.msra.mxu0 0.0
    %482 = vmatprep.subr.mxu0 0.0
    %483 = vmatpush1.msra.mxu0 0.0
    %484 = vmatprep.subr.mxu0 0.0
    %485 = vmatpush1.msra.mxu0 0.0
    %486 = vmatprep.subr.mxu0 0.0
    %487 = vmatpush1.msra.mxu0 0.0
    %488 = vmatprep.subr.mxu0 0.0
    %489 = vmatpush1.msra.mxu0 0.0
    %490 = vmatprep.subr.mxu0 0.0
    %491 = vmatpush1.msra.mxu0 0.0
    %492 = vmatprep.subr.mxu0 0.0
    %493 = vmatpush1.msra.mxu0 0.0
    %494 = vmatprep.subr.mxu0 0.0
    %495 = vmatpush1.msra.mxu0 0.0
    %496 = vmatprep.subr.mxu0 0.0
    %497 = vmatpush1.msra.mxu0 0.0
    %498 = vmatprep.subr.mxu0 0.0
    %499 = vmatpush1.msra.mxu0 0.0
    %500 = vmatprep.subr.mxu0 0.0
    %501 = vmatpush1.msra.mxu0 0.0
    %502 = vmatprep.subr.mxu0 0.0
    %503 = vmatpush1.msra.mxu0 0.0
    %504 = vmatprep.mubr.f32.mxu0 0.0
    %505 = vmatmul.mubr.f32.gmra.mrb[0].mxu0 %v438
    %v506 = vpop.f32.mrb[0].mxu0
    %v507 = vadd.f32 0.0, %v506
    %v508 = vpop.f32.mrb[0].mxu0
    %509 = vdwg.mxu0
    %v511 = vsel %vm182, %v507, 0
    %513 = vmatprep.subr.mxu0 0.0
    %514 = vmatpush1.msra.mxu0 %v63
    %515 = vmatprep.subr.mxu0 0.0
    %516 = vmatpush1.msra.mxu0 0.0
    %517 = vmatprep.subr.mxu0 0.0
    %518 = vmatpush1.msra.mxu0 0.0
    %519 = vmatprep.subr.mxu0 0.0
    %520 = vmatpush1.msra.mxu0 0.0
    %521 = vmatprep.subr.mxu0 0.0
    %522 = vmatpush1.msra.mxu0 0.0
    %523 = vmatprep.subr.mxu0 0.0
    %524 = vmatpush1.msra.mxu0 0.0
    %525 = vmatprep.subr.mxu0 0.0
    %526 = vmatpush1.msra.mxu0 0.0
    %527 = vmatprep.subr.mxu0 0.0
    %528 = vmatpush1.msra.mxu0 0.0
    %529 = vmatprep.subr.mxu0 0.0
    %530 = vmatpush1.msra.mxu0 0.0
    %531 = vmatprep.subr.mxu0 0.0
    %532 = vmatpush1.msra.mxu0 0.0
    %533 = vmatprep.subr.mxu0 0.0
    %534 = vmatpush1.msra.mxu0 0.0
    %535 = vmatprep.subr.mxu0 0.0
    %536 = vmatpush1.msra.mxu0 0.0
    %537 = vmatprep.subr.mxu0 0.0
    %538 = vmatpush1.msra.mxu0 0.0
    %539 = vmatprep.subr.mxu0 0.0
    %540 = vmatpush1.msra.mxu0 0.0
    %541 = vmatprep.subr.mxu0 0.0
    %542 = vmatpush1.msra.mxu0 0.0
    %543 = vmatprep.subr.mxu0 0.0
    %544 = vmatpush1.msra.mxu0 0.0
    %545 = vmatprep.subr.mxu0 0.0
    %546 = vmatpush1.msra.mxu0 0.0
    %547 = vmatprep.subr.mxu0 0.0
    %548 = vmatpush1.msra.mxu0 0.0
    %549 = vmatprep.subr.mxu0 0.0
    %550 = vmatpush1.msra.mxu0 0.0
    %551 = vmatprep.subr.mxu0 0.0
    %552 = vmatpush1.msra.mxu0 0.0
    %553 = vmatprep.subr.mxu0 0.0
    %554 = vmatpush1.msra.mxu0 0.0
    %555 = vmatprep.subr.mxu0 0.0
    %556 = vmatpush1.msra.mxu0 0.0
    %557 = vmatprep.subr.mxu0 0.0
    %558 = vmatpush1.msra.mxu0 0.0
    %559 = vmatprep.subr.mxu0 0.0
    %560 = vmatpush1.msra.mxu0 0.0
    %561 = vmatprep.subr.mxu0 0.0
    %562 = vmatpush1.msra.mxu0 0.0
    %563 = vmatprep.subr.mxu0 0.0
    %564 = vmatpush1.msra.mxu0 0.0
    %565 = vmatprep.subr.mxu0 0.0
    %566 = vmatpush1.msra.mxu0 0.0
    %567 = vmatprep.subr.mxu0 0.0
    %568 = vmatpush1.msra.mxu0 0.0
    %569 = vmatprep.subr.mxu0 0.0
    %570 = vmatpush1.msra.mxu0 0.0
    %571 = vmatprep.subr.mxu0 0.0
    %572 = vmatpush1.msra.mxu0 0.0
    %573 = vmatprep.subr.mxu0 0.0
    %574 = vmatpush1.msra.mxu0 0.0
    %575 = vmatprep.subr.mxu0 0.0
    %576 = vmatpush1.msra.mxu0 0.0
    %577 = vmatprep.mubr.f32.mxu0 0.0
    %578 = vmatmul.mubr.f32.gmra.mrb[0].mxu0 %v511
    %v579 = vpop.f32.mrb[0].mxu0
    %v580 = vadd.f32 0.0, %v579
    %v581 = vpop.f32.mrb[0].mxu0
    %582 = vdwg.mxu0
    %v584 = vsel %vm182, %v342, 0
    %586 = vmatprep.subr.mxu0 0.0
    %587 = vmatpush1.msra.mxu0 %v62
    %588 = vmatprep.subr.mxu0 0.0
    %589 = vmatpush1.msra.mxu0 0.0
    %590 = vmatprep.subr.mxu0 0.0
    %591 = vmatpush1.msra.mxu0 0.0
    %592 = vmatprep.subr.mxu0 0.0
    %593 = vmatpush1.msra.mxu0 0.0
    %594 = vmatprep.subr.mxu0 0.0
    %595 = vmatpush1.msra.mxu0 0.0
    %596 = vmatprep.subr.mxu0 0.0
    %597 = vmatpush1.msra.mxu0 0.0
    %598 = vmatprep.subr.mxu0 0.0
    %599 = vmatpush1.msra.mxu0 0.0
    %600 = vmatprep.subr.mxu0 0.0
    %601 = vmatpush1.msra.mxu0 0.0
    %602 = vmatprep.subr.mxu0 0.0
    %603 = vmatpush1.msra.mxu0 0.0
    %604 = vmatprep.subr.mxu0 0.0
    %605 = vmatpush1.msra.mxu0 0.0
    %606 = vmatprep.subr.mxu0 0.0
    %607 = vmatpush1.msra.mxu0 0.0
    %608 = vmatprep.subr.mxu0 0.0
    %609 = vmatpush1.msra.mxu0 0.0
    %610 = vmatprep.subr.mxu0 0.0
    %611 = vmatpush1.msra.mxu0 0.0
    %612 = vmatprep.subr.mxu0 0.0
    %613 = vmatpush1.msra.mxu0 0.0
    %614 = vmatprep.subr.mxu0 0.0
    %615 = vmatpush1.msra.mxu0 0.0
    %616 = vmatprep.subr.mxu0 0.0
    %617 = vmatpush1.msra.mxu0 0.0
    %618 = vmatprep.subr.mxu0 0.0
    %619 = vmatpush1.msra.mxu0 0.0
    %620 = vmatprep.subr.mxu0 0.0
    %621 = vmatpush1.msra.mxu0 0.0
    %622 = vmatprep.subr.mxu0 0.0
    %623 = vmatpush1.msra.mxu0 0.0
    %624 = vmatprep.subr.mxu0 0.0
    %625 = vmatpush1.msra.mxu0 0.0
    %626 = vmatprep.subr.mxu0 0.0
    %627 = vmatpush1.msra.mxu0 0.0
    %628 = vmatprep.subr.mxu0 0.0
    %629 = vmatpush1.msra.mxu0 0.0
    %630 = vmatprep.subr.mxu0 0.0
    %631 = vmatpush1.msra.mxu0 0.0
    %632 = vmatprep.subr.mxu0 0.0
    %633 = vmatpush1.msra.mxu0 0.0
    %634 = vmatprep.subr.mxu0 0.0
    %635 = vmatpush1.msra.mxu0 0.0
    %636 = vmatprep.subr.mxu0 0.0
    %637 = vmatpush1.msra.mxu0 0.0
    %638 = vmatprep.subr.mxu0 0.0
    %639 = vmatpush1.msra.mxu0 0.0
    %640 = vmatprep.subr.mxu0 0.0
    %641 = vmatpush1.msra.mxu0 0.0
    %642 = vmatprep.subr.mxu0 0.0
    %643 = vmatpush1.msra.mxu0 0.0
    %644 = vmatprep.subr.mxu0 0.0
    %645 = vmatpush1.msra.mxu0 0.0
    %646 = vmatprep.subr.mxu0 0.0
    %647 = vmatpush1.msra.mxu0 0.0
    %648 = vmatprep.subr.mxu0 0.0
    %649 = vmatpush1.msra.mxu0 0.0
    %650 = vmatprep.mubr.f32.mxu0 0.0
    %651 = vmatmul.mubr.f32.gmra.mrb[0].mxu0 %v584
    %v652 = vpop.f32.mrb[0].mxu0
    %v653 = vadd.f32 %v580, %v652
    %v654 = vpop.f32.mrb[0].mxu0
    %655 = vdwg.mxu0
    %656 = vrot.lane.b32.xlu0 %v177, 112
    %v657 = vpop.permute.xlu0 %656
    %658 = vrot.lane.b32.xlu0 %v169, 80
    %v659 = vpop.permute.xlu0 %658
    %v660 = vsel %vm182, %v657, 0
    %v662 = vsel %vm182, %v659, 0
    %664 = vmatprep.subr.mxu0 0.0
    %665 = vmatpush1.xpose.msra.mxu0 %v662
    %666 = vmatprep.subr.mxu0 0.0
    %667 = vmatpush1.xpose.msra.mxu0 0.0
    %668 = vmatprep.subr.mxu0 0.0
    %669 = vmatpush1.xpose.msra.mxu0 0.0
    %670 = vmatprep.subr.mxu0 0.0
    %671 = vmatpush1.xpose.msra.mxu0 0.0
    %672 = vmatprep.subr.mxu0 0.0
    %673 = vmatpush1.xpose.msra.mxu0 0.0
    %674 = vmatprep.subr.mxu0 0.0
    %675 = vmatpush1.xpose.msra.mxu0 0.0
    %676 = vmatprep.subr.mxu0 0.0
    %677 = vmatpush1.xpose.msra.mxu0 0.0
    %678 = vmatprep.subr.mxu0 0.0
    %679 = vmatpush1.xpose.msra.mxu0 0.0
    %680 = vmatprep.subr.mxu0 0.0
    %681 = vmatpush1.xpose.msra.mxu0 0.0
    %682 = vmatprep.subr.mxu0 0.0
    %683 = vmatpush1.xpose.msra.mxu0 0.0
    %684 = vmatprep.subr.mxu0 0.0
    %685 = vmatpush1.xpose.msra.mxu0 0.0
    %686 = vmatprep.subr.mxu0 0.0
    %687 = vmatpush1.xpose.msra.mxu0 0.0
    %688 = vmatprep.subr.mxu0 0.0
    %689 = vmatpush1.xpose.msra.mxu0 0.0
    %690 = vmatprep.subr.mxu0 0.0
    %691 = vmatpush1.xpose.msra.mxu0 0.0
    %692 = vmatprep.subr.mxu0 0.0
    %693 = vmatpush1.xpose.msra.mxu0 0.0
    %694 = vmatprep.subr.mxu0 0.0
    %695 = vmatpush1.xpose.msra.mxu0 0.0
    %696 = vmatprep.subr.mxu0 0.0
    %697 = vmatpush1.xpose.msra.mxu0 0.0
    %698 = vmatprep.subr.mxu0 0.0
    %699 = vmatpush1.xpose.msra.mxu0 0.0
    %700 = vmatprep.subr.mxu0 0.0
    %701 = vmatpush1.xpose.msra.mxu0 0.0
    %702 = vmatprep.subr.mxu0 0.0
    %703 = vmatpush1.xpose.msra.mxu0 0.0
    %704 = vmatprep.subr.mxu0 0.0
    %705 = vmatpush1.xpose.msra.mxu0 0.0
    %706 = vmatprep.subr.mxu0 0.0
    %707 = vmatpush1.xpose.msra.mxu0 0.0
    %708 = vmatprep.subr.mxu0 0.0
    %709 = vmatpush1.xpose.msra.mxu0 0.0
    %710 = vmatprep.subr.mxu0 0.0
    %711 = vmatpush1.xpose.msra.mxu0 0.0
    %712 = vmatprep.subr.mxu0 0.0
    %713 = vmatpush1.xpose.msra.mxu0 0.0
    %714 = vmatprep.subr.mxu0 0.0
    %715 = vmatpush1.xpose.msra.mxu0 0.0
    %716 = vmatprep.subr.mxu0 0.0
    %717 = vmatpush1.xpose.msra.mxu0 0.0
    %718 = vmatprep.subr.mxu0 0.0
    %719 = vmatpush1.xpose.msra.mxu0 0.0
    %720 = vmatprep.subr.mxu0 0.0
    %721 = vmatpush1.xpose.msra.mxu0 0.0
    %722 = vmatprep.subr.mxu0 0.0
    %723 = vmatpush1.xpose.msra.mxu0 0.0
    %724 = vmatprep.subr.mxu0 0.0
    %725 = vmatpush1.xpose.msra.mxu0 0.0
    %726 = vmatprep.subr.mxu0 0.0
    %727 = vmatpush1.xpose.msra.mxu0 0.0
    %728 = vmatprep.mubr.f32.mxu0 0.0
    %729 = vmatmul.mubr.f32.gmra.mrb[0].mxu0 %v660
    %v730 = vpop.f32.mrb[0].mxu0
    %v731 = vadd.f32 0.0, %v730
    %v732 = vpop.f32.mrb[0].mxu0
    %733 = vdwg.mxu0
    %v734 = vsel %vm182, %v731, -inf
    %735 = vmax.xlane.f32.xlu0 %v734
    %v736 = vpop.xlane.xlu0 %735
    %v737 = vsub.f32 %v731, %v736
    %v738 = vmul.f32 %v737, 1.442695
    %v739 = vpow.pop %v738
    %v740 = vsel %vm182, %v739, 0.0
    %741 = vadd.xlane.f32.xlu0 %v740
    %v742 = vpop.xlane.xlu0 %741
    %v743 = vrcp.pop %v742
    %v744 = vmul.f32 %v739, %v743
    %745 = vrot.lane.b32.xlu0 %v169, 48
    %v746 = vpop.permute.xlu0 %745
    %v749 = vsel %vm182, %v744, 0
    %751 = vmatprep.subr.mxu0 0.0
    %752 = vmatpush1.msra.mxu0 %v746
    %753 = vmatprep.subr.mxu0 0.0
    %754 = vmatpush1.msra.mxu0 0.0
    %755 = vmatprep.subr.mxu0 0.0
    %756 = vmatpush1.msra.mxu0 0.0
    %757 = vmatprep.subr.mxu0 0.0
    %758 = vmatpush1.msra.mxu0 0.0
    %759 = vmatprep.subr.mxu0 0.0
    %760 = vmatpush1.msra.mxu0 0.0
    %761 = vmatprep.subr.mxu0 0.0
    %762 = vmatpush1.msra.mxu0 0.0
    %763 = vmatprep.subr.mxu0 0.0
    %764 = vmatpush1.msra.mxu0 0.0
    %765 = vmatprep.subr.mxu0 0.0
    %766 = vmatpush1.msra.mxu0 0.0
    %767 = vmatprep.subr.mxu0 0.0
    %768 = vmatpush1.msra.mxu0 0.0
    %769 = vmatprep.subr.mxu0 0.0
    %770 = vmatpush1.msra.mxu0 0.0
    %771 = vmatprep.subr.mxu0 0.0
    %772 = vmatpush1.msra.mxu0 0.0
    %773 = vmatprep.subr.mxu0 0.0
    %774 = vmatpush1.msra.mxu0 0.0
    %775 = vmatprep.subr.mxu0 0.0
    %776 = vmatpush1.msra.mxu0 0.0
    %777 = vmatprep.subr.mxu0 0.0
    %778 = vmatpush1.msra.mxu0 0.0
    %779 = vmatprep.subr.mxu0 0.0
    %780 = vmatpush1.msra.mxu0 0.0
    %781 = vmatprep.subr.mxu0 0.0
    %782 = vmatpush1.msra.mxu0 0.0
    %783 = vmatprep.subr.mxu0 0.0
    %784 = vmatpush1.msra.mxu0 0.0
    %785 = vmatprep.subr.mxu0 0.0
    %786 = vmatpush1.msra.mxu0 0.0
    %787 = vmatprep.subr.mxu0 0.0
    %788 = vmatpush1.msra.mxu0 0.0
    %789 = vmatprep.subr.mxu0 0.0
    %790 = vmatpush1.msra.mxu0 0.0
    %791 = vmatprep.subr.mxu0 0.0
    %792 = vmatpush1.msra.mxu0 0.0
    %793 = vmatprep.subr.mxu0 0.0
    %794 = vmatpush1.msra.mxu0 0.0
    %795 = vmatprep.subr.mxu0 0.0
    %796 = vmatpush1.msra.mxu0 0.0
    %797 = vmatprep.subr.mxu0 0.0
    %798 = vmatpush1.msra.mxu0 0.0
    %799 = vmatprep.subr.mxu0 0.0
    %800 = vmatpush1.msra.mxu0 0.0
    %801 = vmatprep.subr.mxu0 0.0
    %802 = vmatpush1.msra.mxu0 0.0
    %803 = vmatprep.subr.mxu0 0.0
    %804 = vmatpush1.msra.mxu0 0.0
    %805 = vmatprep.subr.mxu0 0.0
    %806 = vmatpush1.msra.mxu0 0.0
    %807 = vmatprep.subr.mxu0 0.0
    %808 = vmatpush1.msra.mxu0 0.0
    %809 = vmatprep.subr.mxu0 0.0
    %810 = vmatpush1.msra.mxu0 0.0
    %811 = vmatprep.subr.mxu0 0.0
    %812 = vmatpush1.msra.mxu0 0.0
    %813 = vmatprep.subr.mxu0 0.0
    %814 = vmatpush1.msra.mxu0 0.0
    %815 = vmatprep.mubr.f32.mxu0 0.0
    %816 = vmatmul.mubr.f32.gmra.mrb[0].mxu0 %v749
    %v817 = vpop.f32.mrb[0].mxu0
    %v818 = vadd.f32 0.0, %v817
    %v819 = vpop.f32.mrb[0].mxu0
    %820 = vdwg.mxu0
    %v822 = vsel %vm182, %v818, 0
    %824 = vmatprep.subr.mxu0 0.0
    %825 = vmatpush1.msra.mxu0 %v64
    %826 = vmatprep.subr.mxu0 0.0
    %827 = vmatpush1.msra.mxu0 0.0
    %828 = vmatprep.subr.mxu0 0.0
    %829 = vmatpush1.msra.mxu0 0.0
    %830 = vmatprep.subr.mxu0 0.0
    %831 = vmatpush1.msra.mxu0 0.0
    %832 = vmatprep.subr.mxu0 0.0
    %833 = vmatpush1.msra.mxu0 0.0
    %834 = vmatprep.subr.mxu0 0.0
    %835 = vmatpush1.msra.mxu0 0.0
    %836 = vmatprep.subr.mxu0 0.0
    %837 = vmatpush1.msra.mxu0 0.0
    %838 = vmatprep.subr.mxu0 0.0
    %839 = vmatpush1.msra.mxu0 0.0
    %840 = vmatprep.subr.mxu0 0.0
    %841 = vmatpush1.msra.mxu0 0.0
    %842 = vmatprep.subr.mxu0 0.0
    %843 = vmatpush1.msra.mxu0 0.0
    %844 = vmatprep.subr.mxu0 0.0
    %845 = vmatpush1.msra.mxu0 0.0
    %846 = vmatprep.subr.mxu0 0.0
    %847 = vmatpush1.msra.mxu0 0.0
    %848 = vmatprep.subr.mxu0 0.0
    %849 = vmatpush1.msra.mxu0 0.0
    %850 = vmatprep.subr.mxu0 0.0
    %851 = vmatpush1.msra.mxu0 0.0
    %852 = vmatprep.subr.mxu0 0.0
    %853 = vmatpush1.msra.mxu0 0.0
    %854 = vmatprep.subr.mxu0 0.0
    %855 = vmatpush1.msra.mxu0 0.0
    %856 = vmatprep.subr.mxu0 0.0
    %857 = vmatpush1.msra.mxu0 0.0
    %858 = vmatprep.subr.mxu0 0.0
    %859 = vmatpush1.msra.mxu0 0.0
    %860 = vmatprep.subr.mxu0 0.0
    %861 = vmatpush1.msra.mxu0 0.0
    %862 = vmatprep.subr.mxu0 0.0
    %863 = vmatpush1.msra.mxu0 0.0
    %864 = vmatprep.subr.mxu0 0.0
    %865 = vmatpush1.msra.mxu0 0.0
    %866 = vmatprep.subr.mxu0 0.0
    %867 = vmatpush1.msra.mxu0 0.0
    %868 = vmatprep.subr.mxu0 0.0
    %869 = vmatpush1.msra.mxu0 0.0
    %870 = vmatprep.subr.mxu0 0.0
    %871 = vmatpush1.msra.mxu0 0.0
    %872 = vmatprep.subr.mxu0 0.0
    %873 = vmatpush1.msra.mxu0 0.0
    %874 = vmatprep.subr.mxu0 0.0
    %875 = vmatpush1.msra.mxu0 0.0
    %876 = vmatprep.subr.mxu0 0.0
    %877 = vmatpush1.msra.mxu0 0.0
    %878 = vmatprep.subr.mxu0 0.0
    %879 = vmatpush1.msra.mxu0 0.0
    %880 = vmatprep.subr.mxu0 0.0
    %881 = vmatpush1.msra.mxu0 0.0
    %882 = vmatprep.subr.mxu0 0.0
    %883 = vmatpush1.msra.mxu0 0.0
    %884 = vmatprep.subr.mxu0 0.0
    %885 = vmatpush1.msra.mxu0 0.0
    %886 = vmatprep.subr.mxu0 0.0
    %887 = vmatpush1.msra.mxu0 0.0
    %888 = vmatprep.mubr.f32.mxu0 0.0
    %889 = vmatmul.mubr.f32.gmra.mrb[0].mxu0 %v822
    %v890 = vpop.f32.mrb[0].mxu0
    %v891 = vadd.f32 0.0, %v890
    %v892 = vpop.f32.mrb[0].mxu0
    %893 = vdwg.mxu0
    %v894 = vadd.f32 %v653, %v891
    %895 = vrot.lane.b32.xlu0 %v177, 104
    %v896 = vpop.permute.xlu0 %895
    %897 = vrot.lane.b32.xlu0 %v169, 72
    %v898 = vpop.permute.xlu0 %897
    %v899 = vsel %vm182, %v896, 0
    %v901 = vsel %vm182, %v898, 0
    %903 = vmatprep.subr.mxu0 0.0
    %904 = vmatpush1.xpose.msra.mxu0 %v901
    %905 = vmatprep.subr.mxu0 0.0
    %906 = vmatpush1.xpose.msra.mxu0 0.0
    %907 = vmatprep.subr.mxu0 0.0
    %908 = vmatpush1.xpose.msra.mxu0 0.0
    %909 = vmatprep.subr.mxu0 0.0
    %910 = vmatpush1.xpose.msra.mxu0 0.0
    %911 = vmatprep.subr.mxu0 0.0
    %912 = vmatpush1.xpose.msra.mxu0 0.0
    %913 = vmatprep.subr.mxu0 0.0
    %914 = vmatpush1.xpose.msra.mxu0 0.0
    %915 = vmatprep.subr.mxu0 0.0
    %916 = vmatpush1.xpose.msra.mxu0 0.0
    %917 = vmatprep.subr.mxu0 0.0
    %918 = vmatpush1.xpose.msra.mxu0 0.0
    %919 = vmatprep.subr.mxu0 0.0
    %920 = vmatpush1.xpose.msra.mxu0 0.0
    %921 = vmatprep.subr.mxu0 0.0
    %922 = vmatpush1.xpose.msra.mxu0 0.0
    %923 = vmatprep.subr.mxu0 0.0
    %924 = vmatpush1.xpose.msra.mxu0 0.0
    %925 = vmatprep.subr.mxu0 0.0
    %926 = vmatpush1.xpose.msra.mxu0 0.0
    %927 = vmatprep.subr.mxu0 0.0
    %928 = vmatpush1.xpose.msra.mxu0 0.0
    %929 = vmatprep.subr.mxu0 0.0
    %930 = vmatpush1.xpose.msra.mxu0 0.0
    %931 = vmatprep.subr.mxu0 0.0
    %932 = vmatpush1.xpose.msra.mxu0 0.0
    %933 = vmatprep.subr.mxu0 0.0
    %934 = vmatpush1.xpose.msra.mxu0 0.0
    %935 = vmatprep.subr.mxu0 0.0
    %936 = vmatpush1.xpose.msra.mxu0 0.0
    %937 = vmatprep.subr.mxu0 0.0
    %938 = vmatpush1.xpose.msra.mxu0 0.0
    %939 = vmatprep.subr.mxu0 0.0
    %940 = vmatpush1.xpose.msra.mxu0 0.0
    %941 = vmatprep.subr.mxu0 0.0
    %942 = vmatpush1.xpose.msra.mxu0 0.0
    %943 = vmatprep.subr.mxu0 0.0
    %944 = vmatpush1.xpose.msra.mxu0 0.0
    %945 = vmatprep.subr.mxu0 0.0
    %946 = vmatpush1.xpose.msra.mxu0 0.0
    %947 = vmatprep.subr.mxu0 0.0
    %948 = vmatpush1.xpose.msra.mxu0 0.0
    %949 = vmatprep.subr.mxu0 0.0
    %950 = vmatpush1.xpose.msra.mxu0 0.0
    %951 = vmatprep.subr.mxu0 0.0
    %952 = vmatpush1.xpose.msra.mxu0 0.0
    %953 = vmatprep.subr.mxu0 0.0
    %954 = vmatpush1.xpose.msra.mxu0 0.0
    %955 = vmatprep.subr.mxu0 0.0
    %956 = vmatpush1.xpose.msra.mxu0 0.0
    %957 = vmatprep.subr.mxu0 0.0
    %958 = vmatpush1.xpose.msra.mxu0 0.0
    %959 = vmatprep.subr.mxu0 0.0
    %960 = vmatpush1.xpose.msra.mxu0 0.0
    %961 = vmatprep.subr.mxu0 0.0
    %962 = vmatpush1.xpose.msra.mxu0 0.0
    %963 = vmatprep.subr.mxu0 0.0
    %964 = vmatpush1.xpose.msra.mxu0 0.0
    %965 = vmatprep.subr.mxu0 0.0
    %966 = vmatpush1.xpose.msra.mxu0 0.0
    %967 = vmatprep.mubr.f32.mxu0 0.0
    %968 = vmatmul.mubr.f32.gmra.mrb[0].mxu0 %v899
    %v969 = vpop.f32.mrb[0].mxu0
    %v970 = vadd.f32 0.0, %v969
    %v971 = vpop.f32.mrb[0].mxu0
    %972 = vdwg.mxu0
    %v973 = vsel %vm182, %v970, -inf
    %974 = vmax.xlane.f32.xlu0 %v973
    %v975 = vpop.xlane.xlu0 %974
    %v976 = vsub.f32 %v970, %v975
    %v977 = vmul.f32 %v976, 1.442695
    %v978 = vpow.pop %v977
    %v979 = vsel %vm182, %v978, 0.0
    %980 = vadd.xlane.f32.xlu0 %v979
    %v981 = vpop.xlane.xlu0 %980
    %v982 = vrcp.pop %v981
    %v983 = vmul.f32 %v978, %v982
    %984 = vrot.lane.b32.xlu0 %v169, 40
    %v985 = vpop.permute.xlu0 %984
    %v988 = vsel %vm182, %v983, 0
    %990 = vmatprep.subr.mxu0 0.0
    %991 = vmatpush1.msra.mxu0 %v985
    %992 = vmatprep.subr.mxu0 0.0
    %993 = vmatpush1.msra.mxu0 0.0
    %994 = vmatprep.subr.mxu0 0.0
    %995 = vmatpush1.msra.mxu0 0.0
    %996 = vmatprep.subr.mxu0 0.0
    %997 = vmatpush1.msra.mxu0 0.0
    %998 = vmatprep.subr.mxu0 0.0
    %999 = vmatpush1.msra.mxu0 0.0
    %1000 = vmatprep.subr.mxu0 0.0
    %1001 = vmatpush1.msra.mxu0 0.0
    %1002 = vmatprep.subr.mxu0 0.0
    %1003 = vmatpush1.msra.mxu0 0.0
    %1004 = vmatprep.subr.mxu0 0.0
    %1005 = vmatpush1.msra.mxu0 0.0
    %1006 = vmatprep.subr.mxu0 0.0
    %1007 = vmatpush1.msra.mxu0 0.0
    %1008 = vmatprep.subr.mxu0 0.0
    %1009 = vmatpush1.msra.mxu0 0.0
    %1010 = vmatprep.subr.mxu0 0.0
    %1011 = vmatpush1.msra.mxu0 0.0
    %1012 = vmatprep.subr.mxu0 0.0
    %1013 = vmatpush1.msra.mxu0 0.0
    %1014 = vmatprep.subr.mxu0 0.0
    %1015 = vmatpush1.msra.mxu0 0.0
    %1016 = vmatprep.subr.mxu0 0.0
    %1017 = vmatpush1.msra.mxu0 0.0
    %1018 = vmatprep.subr.mxu0 0.0
    %1019 = vmatpush1.msra.mxu0 0.0
    %1020 = vmatprep.subr.mxu0 0.0
    %1021 = vmatpush1.msra.mxu0 0.0
    %1022 = vmatprep.subr.mxu0 0.0
    %1023 = vmatpush1.msra.mxu0 0.0
    %1024 = vmatprep.subr.mxu0 0.0
    %1025 = vmatpush1.msra.mxu0 0.0
    %1026 = vmatprep.subr.mxu0 0.0
    %1027 = vmatpush1.msra.mxu0 0.0
    %1028 = vmatprep.subr.mxu0 0.0
    %1029 = vmatpush1.msra.mxu0 0.0
    %1030 = vmatprep.subr.mxu0 0.0
    %1031 = vmatpush1.msra.mxu0 0.0
    %1032 = vmatprep.subr.mxu0 0.0
    %1033 = vmatpush1.msra.mxu0 0.0
    %1034 = vmatprep.subr.mxu0 0.0
    %1035 = vmatpush1.msra.mxu0 0.0
    %1036 = vmatprep.subr.mxu0 0.0
    %1037 = vmatpush1.msra.mxu0 0.0
    %1038 = vmatprep.subr.mxu0 0.0
    %1039 = vmatpush1.msra.mxu0 0.0
    %1040 = vmatprep.subr.mxu0 0.0
    %1041 = vmatpush1.msra.mxu0 0.0
    %1042 = vmatprep.subr.mxu0 0.0
    %1043 = vmatpush1.msra.mxu0 0.0
    %1044 = vmatprep.subr.mxu0 0.0
    %1045 = vmatpush1.msra.mxu0 0.0
    %1046 = vmatprep.subr.mxu0 0.0
    %1047 = vmatpush1.msra.mxu0 0.0
    %1048 = vmatprep.subr.mxu0 0.0
    %1049 = vmatpush1.msra.mxu0 0.0
    %1050 = vmatprep.subr.mxu0 0.0
    %1051 = vmatpush1.msra.mxu0 0.0
    %1052 = vmatprep.subr.mxu0 0.0
    %1053 = vmatpush1.msra.mxu0 0.0
    %1054 = vmatprep.mubr.f32.mxu0 0.0
    %1055 = vmatmul.mubr.f32.gmra.mrb[0].mxu0 %v988
    %v1056 = vpop.f32.mrb[0].mxu0
    %v1057 = vadd.f32 0.0, %v1056
    %v1058 = vpop.f32.mrb[0].mxu0
    %1059 = vdwg.mxu0
    %v1061 = vsel %vm182, %v1057, 0
    %1063 = vmatprep.subr.mxu0 0.0
    %1064 = vmatpush1.msra.mxu0 %v65
    %1065 = vmatprep.subr.mxu0 0.0
    %1066 = vmatpush1.msra.mxu0 0.0
    %1067 = vmatprep.subr.mxu0 0.0
    %1068 = vmatpush1.msra.mxu0 0.0
    %1069 = vmatprep.subr.mxu0 0.0
    %1070 = vmatpush1.msra.mxu0 0.0
    %1071 = vmatprep.subr.mxu0 0.0
    %1072 = vmatpush1.msra.mxu0 0.0
    %1073 = vmatprep.subr.mxu0 0.0
    %1074 = vmatpush1.msra.mxu0 0.0
    %1075 = vmatprep.subr.mxu0 0.0
    %1076 = vmatpush1.msra.mxu0 0.0
    %1077 = vmatprep.subr.mxu0 0.0
    %1078 = vmatpush1.msra.mxu0 0.0
    %1079 = vmatprep.subr.mxu0 0.0
    %1080 = vmatpush1.msra.mxu0 0.0
    %1081 = vmatprep.subr.mxu0 0.0
    %1082 = vmatpush1.msra.mxu0 0.0
    %1083 = vmatprep.subr.mxu0 0.0
    %1084 = vmatpush1.msra.mxu0 0.0
    %1085 = vmatprep.subr.mxu0 0.0
    %1086 = vmatpush1.msra.mxu0 0.0
    %1087 = vmatprep.subr.mxu0 0.0
    %1088 = vmatpush1.msra.mxu0 0.0
    %1089 = vmatprep.subr.mxu0 0.0
    %1090 = vmatpush1.msra.mxu0 0.0
    %1091 = vmatprep.subr.mxu0 0.0
    %1092 = vmatpush1.msra.mxu0 0.0
    %1093 = vmatprep.subr.mxu0 0.0
    %1094 = vmatpush1.msra.mxu0 0.0
    %1095 = vmatprep.subr.mxu0 0.0
    %1096 = vmatpush1.msra.mxu0 0.0
    %1097 = vmatprep.subr.mxu0 0.0
    %1098 = vmatpush1.msra.mxu0 0.0
    %1099 = vmatprep.subr.mxu0 0.0
    %1100 = vmatpush1.msra.mxu0 0.0
    %1101 = vmatprep.subr.mxu0 0.0
    %1102 = vmatpush1.msra.mxu0 0.0
    %1103 = vmatprep.subr.mxu0 0.0
    %1104 = vmatpush1.msra.mxu0 0.0
    %1105 = vmatprep.subr.mxu0 0.0
    %1106 = vmatpush1.msra.mxu0 0.0
    %1107 = vmatprep.subr.mxu0 0.0
    %1108 = vmatpush1.msra.mxu0 0.0
    %1109 = vmatprep.subr.mxu0 0.0
    %1110 = vmatpush1.msra.mxu0 0.0
    %1111 = vmatprep.subr.mxu0 0.0
    %1112 = vmatpush1.msra.mxu0 0.0
    %1113 = vmatprep.subr.mxu0 0.0
    %1114 = vmatpush1.msra.mxu0 0.0
    %1115 = vmatprep.subr.mxu0 0.0
    %1116 = vmatpush1.msra.mxu0 0.0
    %1117 = vmatprep.subr.mxu0 0.0
    %1118 = vmatpush1.msra.mxu0 0.0
    %1119 = vmatprep.subr.mxu0 0.0
    %1120 = vmatpush1.msra.mxu0 0.0
    %1121 = vmatprep.subr.mxu0 0.0
    %1122 = vmatpush1.msra.mxu0 0.0
    %1123 = vmatprep.subr.mxu0 0.0
    %1124 = vmatpush1.msra.mxu0 0.0
    %1125 = vmatprep.subr.mxu0 0.0
    %1126 = vmatpush1.msra.mxu0 0.0
    %1127 = vmatprep.mubr.f32.mxu0 0.0
    %1128 = vmatmul.mubr.f32.gmra.mrb[0].mxu0 %v1061
    %v1129 = vpop.f32.mrb[0].mxu0
    %v1130 = vadd.f32 0.0, %v1129
    %v1131 = vpop.f32.mrb[0].mxu0
    %1132 = vdwg.mxu0
    %v1133 = vadd.f32 %v894, %v1130
    %1135 = vrot.lane.b32.xlu0 %v174, 96
    %v1136 = vpop.permute.xlu0 %1135
    %v1138 = vsel %vm182, %v178, 0
    %v1140 = vsel %vm182, %v1136, 0
    %1142 = vmatprep.subr.mxu0 0.0
    %1143 = vmatpush1.xpose.msra.mxu0 %v1140
    %1144 = vmatprep.subr.mxu0 0.0
    %1145 = vmatpush1.xpose.msra.mxu0 0.0
    %1146 = vmatprep.subr.mxu0 0.0
    %1147 = vmatpush1.xpose.msra.mxu0 0.0
    %1148 = vmatprep.subr.mxu0 0.0
    %1149 = vmatpush1.xpose.msra.mxu0 0.0
    %1150 = vmatprep.subr.mxu0 0.0
    %1151 = vmatpush1.xpose.msra.mxu0 0.0
    %1152 = vmatprep.subr.mxu0 0.0
    %1153 = vmatpush1.xpose.msra.mxu0 0.0
    %1154 = vmatprep.subr.mxu0 0.0
    %1155 = vmatpush1.xpose.msra.mxu0 0.0
    %1156 = vmatprep.subr.mxu0 0.0
    %1157 = vmatpush1.xpose.msra.mxu0 0.0
    %1158 = vmatprep.subr.mxu0 0.0
    %1159 = vmatpush1.xpose.msra.mxu0 0.0
    %1160 = vmatprep.subr.mxu0 0.0
    %1161 = vmatpush1.xpose.msra.mxu0 0.0
    %1162 = vmatprep.subr.mxu0 0.0
    %1163 = vmatpush1.xpose.msra.mxu0 0.0
    %1164 = vmatprep.subr.mxu0 0.0
    %1165 = vmatpush1.xpose.msra.mxu0 0.0
    %1166 = vmatprep.subr.mxu0 0.0
    %1167 = vmatpush1.xpose.msra.mxu0 0.0
    %1168 = vmatprep.subr.mxu0 0.0
    %1169 = vmatpush1.xpose.msra.mxu0 0.0
    %1170 = vmatprep.subr.mxu0 0.0
    %1171 = vmatpush1.xpose.msra.mxu0 0.0
    %1172 = vmatprep.subr.mxu0 0.0
    %1173 = vmatpush1.xpose.msra.mxu0 0.0
    %1174 = vmatprep.subr.mxu0 0.0
    %1175 = vmatpush1.xpose.msra.mxu0 0.0
    %1176 = vmatprep.subr.mxu0 0.0
    %1177 = vmatpush1.xpose.msra.mxu0 0.0
    %1178 = vmatprep.subr.mxu0 0.0
    %1179 = vmatpush1.xpose.msra.mxu0 0.0
    %1180 = vmatprep.subr.mxu0 0.0
    %1181 = vmatpush1.xpose.msra.mxu0 0.0
    %1182 = vmatprep.subr.mxu0 0.0
    %1183 = vmatpush1.xpose.msra.mxu0 0.0
    %1184 = vmatprep.subr.mxu0 0.0
    %1185 = vmatpush1.xpose.msra.mxu0 0.0
    %1186 = vmatprep.subr.mxu0 0.0
    %1187 = vmatpush1.xpose.msra.mxu0 0.0
    %1188 = vmatprep.subr.mxu0 0.0
    %1189 = vmatpush1.xpose.msra.mxu0 0.0
    %1190 = vmatprep.subr.mxu0 0.0
    %1191 = vmatpush1.xpose.msra.mxu0 0.0
    %1192 = vmatprep.subr.mxu0 0.0
    %1193 = vmatpush1.xpose.msra.mxu0 0.0
    %1194 = vmatprep.subr.mxu0 0.0
    %1195 = vmatpush1.xpose.msra.mxu0 0.0
    %1196 = vmatprep.subr.mxu0 0.0
    %1197 = vmatpush1.xpose.msra.mxu0 0.0
    %1198 = vmatprep.subr.mxu0 0.0
    %1199 = vmatpush1.xpose.msra.mxu0 0.0
    %1200 = vmatprep.subr.mxu0 0.0
    %1201 = vmatpush1.xpose.msra.mxu0 0.0
    %1202 = vmatprep.subr.mxu0 0.0
    %1203 = vmatpush1.xpose.msra.mxu0 0.0
    %1204 = vmatprep.subr.mxu0 0.0
    %1205 = vmatpush1.xpose.msra.mxu0 0.0
    %1206 = vmatprep.mubr.f32.mxu0 0.0
    %1207 = vmatmul.mubr.f32.gmra.mrb[0].mxu0 %v1138
    %v1208 = vpop.f32.mrb[0].mxu0
    %v1209 = vadd.f32 0.0, %v1208
    %v1210 = vpop.f32.mrb[0].mxu0
    %1211 = vdwg.mxu0
    %v1212 = vsel %vm182, %v1209, -inf
    %1213 = vmax.xlane.f32.xlu0 %v1212
    %v1214 = vpop.xlane.xlu0 %1213
    %v1215 = vsub.f32 %v1209, %v1214
    %v1216 = vmul.f32 %v1215, 1.442695
    %v1217 = vpow.pop %v1216
    %v1218 = vsel %vm182, %v1217, 0.0
    %1219 = vadd.xlane.f32.xlu0 %v1218
    %v1220 = vpop.xlane.xlu0 %1219
    %v1221 = vrcp.pop %v1220
    %v1222 = vmul.f32 %v1217, %v1221
    %1223 = vrot.lane.b32.xlu0 %v174, 64
    %v1224 = vpop.permute.xlu0 %1223
    %v1227 = vsel %vm182, %v1222, 0
    %1229 = vmatprep.subr.mxu0 0.0
    %1230 = vmatpush1.msra.mxu0 %v1224
    %1231 = vmatprep.subr.mxu0 0.0
    %1232 = vmatpush1.msra.mxu0 0.0
    %1233 = vmatprep.subr.mxu0 0.0
    %1234 = vmatpush1.msra.mxu0 0.0
    %1235 = vmatprep.subr.mxu0 0.0
    %1236 = vmatpush1.msra.mxu0 0.0
    %1237 = vmatprep.subr.mxu0 0.0
    %1238 = vmatpush1.msra.mxu0 0.0
    %1239 = vmatprep.subr.mxu0 0.0
    %1240 = vmatpush1.msra.mxu0 0.0
    %1241 = vmatprep.subr.mxu0 0.0
    %1242 = vmatpush1.msra.mxu0 0.0
    %1243 = vmatprep.subr.mxu0 0.0
    %1244 = vmatpush1.msra.mxu0 0.0
    %1245 = vmatprep.subr.mxu0 0.0
    %1246 = vmatpush1.msra.mxu0 0.0
    %1247 = vmatprep.subr.mxu0 0.0
    %1248 = vmatpush1.msra.mxu0 0.0
    %1249 = vmatprep.subr.mxu0 0.0
    %1250 = vmatpush1.msra.mxu0 0.0
    %1251 = vmatprep.subr.mxu0 0.0
    %1252 = vmatpush1.msra.mxu0 0.0
    %1253 = vmatprep.subr.mxu0 0.0
    %1254 = vmatpush1.msra.mxu0 0.0
    %1255 = vmatprep.subr.mxu0 0.0
    %1256 = vmatpush1.msra.mxu0 0.0
    %1257 = vmatprep.subr.mxu0 0.0
    %1258 = vmatpush1.msra.mxu0 0.0
    %1259 = vmatprep.subr.mxu0 0.0
    %1260 = vmatpush1.msra.mxu0 0.0
    %1261 = vmatprep.subr.mxu0 0.0
    %1262 = vmatpush1.msra.mxu0 0.0
    %1263 = vmatprep.subr.mxu0 0.0
    %1264 = vmatpush1.msra.mxu0 0.0
    %1265 = vmatprep.subr.mxu0 0.0
    %1266 = vmatpush1.msra.mxu0 0.0
    %1267 = vmatprep.subr.mxu0 0.0
    %1268 = vmatpush1.msra.mxu0 0.0
    %1269 = vmatprep.subr.mxu0 0.0
    %1270 = vmatpush1.msra.mxu0 0.0
    %1271 = vmatprep.subr.mxu0 0.0
    %1272 = vmatpush1.msra.mxu0 0.0
    %1273 = vmatprep.subr.mxu0 0.0
    %1274 = vmatpush1.msra.mxu0 0.0
    %1275 = vmatprep.subr.mxu0 0.0
    %1276 = vmatpush1.msra.mxu0 0.0
    %1277 = vmatprep.subr.mxu0 0.0
    %1278 = vmatpush1.msra.mxu0 0.0
    %1279 = vmatprep.subr.mxu0 0.0
    %1280 = vmatpush1.msra.mxu0 0.0
    %1281 = vmatprep.subr.mxu0 0.0
    %1282 = vmatpush1.msra.mxu0 0.0
    %1283 = vmatprep.subr.mxu0 0.0
    %1284 = vmatpush1.msra.mxu0 0.0
    %1285 = vmatprep.subr.mxu0 0.0
    %1286 = vmatpush1.msra.mxu0 0.0
    %1287 = vmatprep.subr.mxu0 0.0
    %1288 = vmatpush1.msra.mxu0 0.0
    %1289 = vmatprep.subr.mxu0 0.0
    %1290 = vmatpush1.msra.mxu0 0.0
    %1291 = vmatprep.subr.mxu0 0.0
    %1292 = vmatpush1.msra.mxu0 0.0
    %1293 = vmatprep.mubr.f32.mxu0 0.0
    %1294 = vmatmul.mubr.f32.gmra.mrb[0].mxu0 %v1227
    %v1295 = vpop.f32.mrb[0].mxu0
    %v1296 = vadd.f32 0.0, %v1295
    %v1297 = vpop.f32.mrb[0].mxu0
    %1298 = vdwg.mxu0
    %1299 = vrot.lane.b32.xlu0 %v178, 120
    %v1300 = vpop.permute.xlu0 %1299
    %1301 = vrot.lane.b32.xlu0 %v174, 88
    %v1302 = vpop.permute.xlu0 %1301
    %v1303 = vsel %vm182, %v1300, 0
    %v1305 = vsel %vm182, %v1302, 0
    %1307 = vmatprep.subr.mxu0 0.0
    %1308 = vmatpush1.xpose.msra.mxu0 %v1305
    %1309 = vmatprep.subr.mxu0 0.0
    %1310 = vmatpush1.xpose.msra.mxu0 0.0
    %1311 = vmatprep.subr.mxu0 0.0
    %1312 = vmatpush1.xpose.msra.mxu0 0.0
    %1313 = vmatprep.subr.mxu0 0.0
    %1314 = vmatpush1.xpose.msra.mxu0 0.0
    %1315 = vmatprep.subr.mxu0 0.0
    %1316 = vmatpush1.xpose.msra.mxu0 0.0
    %1317 = vmatprep.subr.mxu0 0.0
    %1318 = vmatpush1.xpose.msra.mxu0 0.0
    %1319 = vmatprep.subr.mxu0 0.0
    %1320 = vmatpush1.xpose.msra.mxu0 0.0
    %1321 = vmatprep.subr.mxu0 0.0
    %1322 = vmatpush1.xpose.msra.mxu0 0.0
    %1323 = vmatprep.subr.mxu0 0.0
    %1324 = vmatpush1.xpose.msra.mxu0 0.0
    %1325 = vmatprep.subr.mxu0 0.0
    %1326 = vmatpush1.xpose.msra.mxu0 0.0
    %1327 = vmatprep.subr.mxu0 0.0
    %1328 = vmatpush1.xpose.msra.mxu0 0.0
    %1329 = vmatprep.subr.mxu0 0.0
    %1330 = vmatpush1.xpose.msra.mxu0 0.0
    %1331 = vmatprep.subr.mxu0 0.0
    %1332 = vmatpush1.xpose.msra.mxu0 0.0
    %1333 = vmatprep.subr.mxu0 0.0
    %1334 = vmatpush1.xpose.msra.mxu0 0.0
    %1335 = vmatprep.subr.mxu0 0.0
    %1336 = vmatpush1.xpose.msra.mxu0 0.0
    %1337 = vmatprep.subr.mxu0 0.0
    %1338 = vmatpush1.xpose.msra.mxu0 0.0
    %1339 = vmatprep.subr.mxu0 0.0
    %1340 = vmatpush1.xpose.msra.mxu0 0.0
    %1341 = vmatprep.subr.mxu0 0.0
    %1342 = vmatpush1.xpose.msra.mxu0 0.0
    %1343 = vmatprep.subr.mxu0 0.0
    %1344 = vmatpush1.xpose.msra.mxu0 0.0
    %1345 = vmatprep.subr.mxu0 0.0
    %1346 = vmatpush1.xpose.msra.mxu0 0.0
    %1347 = vmatprep.subr.mxu0 0.0
    %1348 = vmatpush1.xpose.msra.mxu0 0.0
    %1349 = vmatprep.subr.mxu0 0.0
    %1350 = vmatpush1.xpose.msra.mxu0 0.0
    %1351 = vmatprep.subr.mxu0 0.0
    %1352 = vmatpush1.xpose.msra.mxu0 0.0
    %1353 = vmatprep.subr.mxu0 0.0
    %1354 = vmatpush1.xpose.msra.mxu0 0.0
    %1355 = vmatprep.subr.mxu0 0.0
    %1356 = vmatpush1.xpose.msra.mxu0 0.0
    %1357 = vmatprep.subr.mxu0 0.0
    %1358 = vmatpush1.xpose.msra.mxu0 0.0
    %1359 = vmatprep.subr.mxu0 0.0
    %1360 = vmatpush1.xpose.msra.mxu0 0.0
    %1361 = vmatprep.subr.mxu0 0.0
    %1362 = vmatpush1.xpose.msra.mxu0 0.0
    %1363 = vmatprep.subr.mxu0 0.0
    %1364 = vmatpush1.xpose.msra.mxu0 0.0
    %1365 = vmatprep.subr.mxu0 0.0
    %1366 = vmatpush1.xpose.msra.mxu0 0.0
    %1367 = vmatprep.subr.mxu0 0.0
    %1368 = vmatpush1.xpose.msra.mxu0 0.0
    %1369 = vmatprep.subr.mxu0 0.0
    %1370 = vmatpush1.xpose.msra.mxu0 0.0
    %1371 = vmatprep.mubr.f32.mxu0 0.0
    %1372 = vmatmul.mubr.f32.gmra.mrb[0].mxu0 %v1303
    %v1373 = vpop.f32.mrb[0].mxu0
    %v1374 = vadd.f32 0.0, %v1373
    %v1375 = vpop.f32.mrb[0].mxu0
    %1376 = vdwg.mxu0
    %v1377 = vsel %vm182, %v1374, -inf
    %1378 = vmax.xlane.f32.xlu0 %v1377
    %v1379 = vpop.xlane.xlu0 %1378
    %v1380 = vsub.f32 %v1374, %v1379
    %v1381 = vmul.f32 %v1380, 1.442695
    %v1382 = vpow.pop %v1381
    %v1383 = vsel %vm182, %v1382, 0.0
    %1384 = vadd.xlane.f32.xlu0 %v1383
    %v1385 = vpop.xlane.xlu0 %1384
    %v1386 = vrcp.pop %v1385
    %v1387 = vmul.f32 %v1382, %v1386
    %1388 = vrot.lane.b32.xlu0 %v174, 56
    %v1389 = vpop.permute.xlu0 %1388
    %v1392 = vsel %vm182, %v1387, 0
    %1394 = vmatprep.subr.mxu0 0.0
    %1395 = vmatpush1.msra.mxu0 %v1389
    %1396 = vmatprep.subr.mxu0 0.0
    %1397 = vmatpush1.msra.mxu0 0.0
    %1398 = vmatprep.subr.mxu0 0.0
    %1399 = vmatpush1.msra.mxu0 0.0
    %1400 = vmatprep.subr.mxu0 0.0
    %1401 = vmatpush1.msra.mxu0 0.0
    %1402 = vmatprep.subr.mxu0 0.0
    %1403 = vmatpush1.msra.mxu0 0.0
    %1404 = vmatprep.subr.mxu0 0.0
    %1405 = vmatpush1.msra.mxu0 0.0
    %1406 = vmatprep.subr.mxu0 0.0
    %1407 = vmatpush1.msra.mxu0 0.0
    %1408 = vmatprep.subr.mxu0 0.0
    %1409 = vmatpush1.msra.mxu0 0.0
    %1410 = vmatprep.subr.mxu0 0.0
    %1411 = vmatpush1.msra.mxu0 0.0
    %1412 = vmatprep.subr.mxu0 0.0
    %1413 = vmatpush1.msra.mxu0 0.0
    %1414 = vmatprep.subr.mxu0 0.0
    %1415 = vmatpush1.msra.mxu0 0.0
    %1416 = vmatprep.subr.mxu0 0.0
    %1417 = vmatpush1.msra.mxu0 0.0
    %1418 = vmatprep.subr.mxu0 0.0
    %1419 = vmatpush1.msra.mxu0 0.0
    %1420 = vmatprep.subr.mxu0 0.0
    %1421 = vmatpush1.msra.mxu0 0.0
    %1422 = vmatprep.subr.mxu0 0.0
    %1423 = vmatpush1.msra.mxu0 0.0
    %1424 = vmatprep.subr.mxu0 0.0
    %1425 = vmatpush1.msra.mxu0 0.0
    %1426 = vmatprep.subr.mxu0 0.0
    %1427 = vmatpush1.msra.mxu0 0.0
    %1428 = vmatprep.subr.mxu0 0.0
    %1429 = vmatpush1.msra.mxu0 0.0
    %1430 = vmatprep.subr.mxu0 0.0
    %1431 = vmatpush1.msra.mxu0 0.0
    %1432 = vmatprep.subr.mxu0 0.0
    %1433 = vmatpush1.msra.mxu0 0.0
    %1434 = vmatprep.subr.mxu0 0.0
    %1435 = vmatpush1.msra.mxu0 0.0
    %1436 = vmatprep.subr.mxu0 0.0
    %1437 = vmatpush1.msra.mxu0 0.0
    %1438 = vmatprep.subr.mxu0 0.0
    %1439 = vmatpush1.msra.mxu0 0.0
    %1440 = vmatprep.subr.mxu0 0.0
    %1441 = vmatpush1.msra.mxu0 0.0
    %1442 = vmatprep.subr.mxu0 0.0
    %1443 = vmatpush1.msra.mxu0 0.0
    %1444 = vmatprep.subr.mxu0 0.0
    %1445 = vmatpush1.msra.mxu0 0.0
    %1446 = vmatprep.subr.mxu0 0.0
    %1447 = vmatpush1.msra.mxu0 0.0
    %1448 = vmatprep.subr.mxu0 0.0
    %1449 = vmatpush1.msra.mxu0 0.0
    %1450 = vmatprep.subr.mxu0 0.0
    %1451 = vmatpush1.msra.mxu0 0.0
    %1452 = vmatprep.subr.mxu0 0.0
    %1453 = vmatpush1.msra.mxu0 0.0
    %1454 = vmatprep.subr.mxu0 0.0
    %1455 = vmatpush1.msra.mxu0 0.0
    %1456 = vmatprep.subr.mxu0 0.0
    %1457 = vmatpush1.msra.mxu0 0.0
    %1458 = vmatprep.mubr.f32.mxu0 0.0
    %1459 = vmatmul.mubr.f32.gmra.mrb[0].mxu0 %v1392
    %v1460 = vpop.f32.mrb[0].mxu0
    %v1461 = vadd.f32 0.0, %v1460
    %v1462 = vpop.f32.mrb[0].mxu0
    %1463 = vdwg.mxu0
    %v1465 = vsel %vm182, %v1461, 0
    %1467 = vmatprep.subr.mxu0 0.0
    %1468 = vmatpush1.msra.mxu0 %v63
    %1469 = vmatprep.subr.mxu0 0.0
    %1470 = vmatpush1.msra.mxu0 0.0
    %1471 = vmatprep.subr.mxu0 0.0
    %1472 = vmatpush1.msra.mxu0 0.0
    %1473 = vmatprep.subr.mxu0 0.0
    %1474 = vmatpush1.msra.mxu0 0.0
    %1475 = vmatprep.subr.mxu0 0.0
    %1476 = vmatpush1.msra.mxu0 0.0
    %1477 = vmatprep.subr.mxu0 0.0
    %1478 = vmatpush1.msra.mxu0 0.0
    %1479 = vmatprep.subr.mxu0 0.0
    %1480 = vmatpush1.msra.mxu0 0.0
    %1481 = vmatprep.subr.mxu0 0.0
    %1482 = vmatpush1.msra.mxu0 0.0
    %1483 = vmatprep.subr.mxu0 0.0
    %1484 = vmatpush1.msra.mxu0 0.0
    %1485 = vmatprep.subr.mxu0 0.0
    %1486 = vmatpush1.msra.mxu0 0.0
    %1487 = vmatprep.subr.mxu0 0.0
    %1488 = vmatpush1.msra.mxu0 0.0
    %1489 = vmatprep.subr.mxu0 0.0
    %1490 = vmatpush1.msra.mxu0 0.0
    %1491 = vmatprep.subr.mxu0 0.0
    %1492 = vmatpush1.msra.mxu0 0.0
    %1493 = vmatprep.subr.mxu0 0.0
    %1494 = vmatpush1.msra.mxu0 0.0
    %1495 = vmatprep.subr.mxu0 0.0
    %1496 = vmatpush1.msra.mxu0 0.0
    %1497 = vmatprep.subr.mxu0 0.0
    %1498 = vmatpush1.msra.mxu0 0.0
    %1499 = vmatprep.subr.mxu0 0.0
    %1500 = vmatpush1.msra.mxu0 0.0
    %1501 = vmatprep.subr.mxu0 0.0
    %1502 = vmatpush1.msra.mxu0 0.0
    %1503 = vmatprep.subr.mxu0 0.0
    %1504 = vmatpush1.msra.mxu0 0.0
    %1505 = vmatprep.subr.mxu0 0.0
    %1506 = vmatpush1.msra.mxu0 0.0
    %1507 = vmatprep.subr.mxu0 0.0
    %1508 = vmatpush1.msra.mxu0 0.0
    %1509 = vmatprep.subr.mxu0 0.0
    %1510 = vmatpush1.msra.mxu0 0.0
    %1511 = vmatprep.subr.mxu0 0.0
    %1512 = vmatpush1.msra.mxu0 0.0
    %1513 = vmatprep.subr.mxu0 0.0
    %1514 = vmatpush1.msra.mxu0 0.0
    %1515 = vmatprep.subr.mxu0 0.0
    %1516 = vmatpush1.msra.mxu0 0.0
    %1517 = vmatprep.subr.mxu0 0.0
    %1518 = vmatpush1.msra.mxu0 0.0
    %1519 = vmatprep.subr.mxu0 0.0
    %1520 = vmatpush1.msra.mxu0 0.0
    %1521 = vmatprep.subr.mxu0 0.0
    %1522 = vmatpush1.msra.mxu0 0.0
    %1523 = vmatprep.subr.mxu0 0.0
    %1524 = vmatpush1.msra.mxu0 0.0
    %1525 = vmatprep.subr.mxu0 0.0
    %1526 = vmatpush1.msra.mxu0 0.0
    %1527 = vmatprep.subr.mxu0 0.0
    %1528 = vmatpush1.msra.mxu0 0.0
    %1529 = vmatprep.subr.mxu0 0.0
    %1530 = vmatpush1.msra.mxu0 0.0
    %1531 = vmatprep.mubr.f32.mxu0 0.0
    %1532 = vmatmul.mubr.f32.gmra.mrb[0].mxu0 %v1465
    %v1533 = vpop.f32.mrb[0].mxu0
    %v1534 = vadd.f32 0.0, %v1533
    %v1535 = vpop.f32.mrb[0].mxu0
    %1536 = vdwg.mxu0
    %v1538 = vsel %vm182, %v1296, 0
    %1540 = vmatprep.subr.mxu0 0.0
    %1541 = vmatpush1.msra.mxu0 %v62
    %1542 = vmatprep.subr.mxu0 0.0
    %1543 = vmatpush1.msra.mxu0 0.0
    %1544 = vmatprep.subr.mxu0 0.0
    %1545 = vmatpush1.msra.mxu0 0.0
    %1546 = vmatprep.subr.mxu0 0.0
    %1547 = vmatpush1.msra.mxu0 0.0
    %1548 = vmatprep.subr.mxu0 0.0
    %1549 = vmatpush1.msra.mxu0 0.0
    %1550 = vmatprep.subr.mxu0 0.0
    %1551 = vmatpush1.msra.mxu0 0.0
    %1552 = vmatprep.subr.mxu0 0.0
    %1553 = vmatpush1.msra.mxu0 0.0
    %1554 = vmatprep.subr.mxu0 0.0
    %1555 = vmatpush1.msra.mxu0 0.0
    %1556 = vmatprep.subr.mxu0 0.0
    %1557 = vmatpush1.msra.mxu0 0.0
    %1558 = vmatprep.subr.mxu0 0.0
    %1559 = vmatpush1.msra.mxu0 0.0
    %1560 = vmatprep.subr.mxu0 0.0
    %1561 = vmatpush1.msra.mxu0 0.0
    %1562 = vmatprep.subr.mxu0 0.0
    %1563 = vmatpush1.msra.mxu0 0.0
    %1564 = vmatprep.subr.mxu0 0.0
    %1565 = vmatpush1.msra.mxu0 0.0
    %1566 = vmatprep.subr.mxu0 0.0
    %1567 = vmatpush1.msra.mxu0 0.0
    %1568 = vmatprep.subr.mxu0 0.0
    %1569 = vmatpush1.msra.mxu0 0.0
    %1570 = vmatprep.subr.mxu0 0.0
    %1571 = vmatpush1.msra.mxu0 0.0
    %1572 = vmatprep.subr.mxu0 0.0
    %1573 = vmatpush1.msra.mxu0 0.0
    %1574 = vmatprep.subr.mxu0 0.0
    %1575 = vmatpush1.msra.mxu0 0.0
    %1576 = vmatprep.subr.mxu0 0.0
    %1577 = vmatpush1.msra.mxu0 0.0
    %1578 = vmatprep.subr.mxu0 0.0
    %1579 = vmatpush1.msra.mxu0 0.0
    %1580 = vmatprep.subr.mxu0 0.0
    %1581 = vmatpush1.msra.mxu0 0.0
    %1582 = vmatprep.subr.mxu0 0.0
    %1583 = vmatpush1.msra.mxu0 0.0
    %1584 = vmatprep.subr.mxu0 0.0
    %1585 = vmatpush1.msra.mxu0 0.0
    %1586 = vmatprep.subr.mxu0 0.0
    %1587 = vmatpush1.msra.mxu0 0.0
    %1588 = vmatprep.subr.mxu0 0.0
    %1589 = vmatpush1.msra.mxu0 0.0
    %1590 = vmatprep.subr.mxu0 0.0
    %1591 = vmatpush1.msra.mxu0 0.0
    %1592 = vmatprep.subr.mxu0 0.0
    %1593 = vmatpush1.msra.mxu0 0.0
    %1594 = vmatprep.subr.mxu0 0.0
    %1595 = vmatpush1.msra.mxu0 0.0
    %1596 = vmatprep.subr.mxu0 0.0
    %1597 = vmatpush1.msra.mxu0 0.0
    %1598 = vmatprep.subr.mxu0 0.0
    %1599 = vmatpush1.msra.mxu0 0.0
    %1600 = vmatprep.subr.mxu0 0.0
    %1601 = vmatpush1.msra.mxu0 0.0
    %1602 = vmatprep.subr.mxu0 0.0
    %1603 = vmatpush1.msra.mxu0 0.0
    %1604 = vmatprep.mubr.f32.mxu0 0.0
    %1605 = vmatmul.mubr.f32.gmra.mrb[0].mxu0 %v1538
    %v1606 = vpop.f32.mrb[0].mxu0
    %v1607 = vadd.f32 %v1534, %v1606
    %v1608 = vpop.f32.mrb[0].mxu0
    %1609 = vdwg.mxu0
    %1610 = vrot.lane.b32.xlu0 %v178, 112
    %v1611 = vpop.permute.xlu0 %1610
    %1612 = vrot.lane.b32.xlu0 %v174, 80
    %v1613 = vpop.permute.xlu0 %1612
    %v1614 = vsel %vm182, %v1611, 0
    %v1616 = vsel %vm182, %v1613, 0
    %1618 = vmatprep.subr.mxu0 0.0
    %1619 = vmatpush1.xpose.msra.mxu0 %v1616
    %1620 = vmatprep.subr.mxu0 0.0
    %1621 = vmatpush1.xpose.msra.mxu0 0.0
    %1622 = vmatprep.subr.mxu0 0.0
    %1623 = vmatpush1.xpose.msra.mxu0 0.0
    %1624 = vmatprep.subr.mxu0 0.0
    %1625 = vmatpush1.xpose.msra.mxu0 0.0
    %1626 = vmatprep.subr.mxu0 0.0
    %1627 = vmatpush1.xpose.msra.mxu0 0.0
    %1628 = vmatprep.subr.mxu0 0.0
    %1629 = vmatpush1.xpose.msra.mxu0 0.0
    %1630 = vmatprep.subr.mxu0 0.0
    %1631 = vmatpush1.xpose.msra.mxu0 0.0
    %1632 = vmatprep.subr.mxu0 0.0
    %1633 = vmatpush1.xpose.msra.mxu0 0.0
    %1634 = vmatprep.subr.mxu0 0.0
    %1635 = vmatpush1.xpose.msra.mxu0 0.0
    %1636 = vmatprep.subr.mxu0 0.0
    %1637 = vmatpush1.xpose.msra.mxu0 0.0
    %1638 = vmatprep.subr.mxu0 0.0
    %1639 = vmatpush1.xpose.msra.mxu0 0.0
    %1640 = vmatprep.subr.mxu0 0.0
    %1641 = vmatpush1.xpose.msra.mxu0 0.0
    %1642 = vmatprep.subr.mxu0 0.0
    %1643 = vmatpush1.xpose.msra.mxu0 0.0
    %1644 = vmatprep.subr.mxu0 0.0
    %1645 = vmatpush1.xpose.msra.mxu0 0.0
    %1646 = vmatprep.subr.mxu0 0.0
    %1647 = vmatpush1.xpose.msra.mxu0 0.0
    %1648 = vmatprep.subr.mxu0 0.0
    %1649 = vmatpush1.xpose.msra.mxu0 0.0
    %1650 = vmatprep.subr.mxu0 0.0
    %1651 = vmatpush1.xpose.msra.mxu0 0.0
    %1652 = vmatprep.subr.mxu0 0.0
    %1653 = vmatpush1.xpose.msra.mxu0 0.0
    %1654 = vmatprep.subr.mxu0 0.0
    %1655 = vmatpush1.xpose.msra.mxu0 0.0
    %1656 = vmatprep.subr.mxu0 0.0
    %1657 = vmatpush1.xpose.msra.mxu0 0.0
    %1658 = vmatprep.subr.mxu0 0.0
    %1659 = vmatpush1.xpose.msra.mxu0 0.0
    %1660 = vmatprep.subr.mxu0 0.0
    %1661 = vmatpush1.xpose.msra.mxu0 0.0
    %1662 = vmatprep.subr.mxu0 0.0
    %1663 = vmatpush1.xpose.msra.mxu0 0.0
    %1664 = vmatprep.subr.mxu0 0.0
    %1665 = vmatpush1.xpose.msra.mxu0 0.0
    %1666 = vmatprep.subr.mxu0 0.0
    %1667 = vmatpush1.xpose.msra.mxu0 0.0
    %1668 = vmatprep.subr.mxu0 0.0
    %1669 = vmatpush1.xpose.msra.mxu0 0.0
    %1670 = vmatprep.subr.mxu0 0.0
    %1671 = vmatpush1.xpose.msra.mxu0 0.0
    %1672 = vmatprep.subr.mxu0 0.0
    %1673 = vmatpush1.xpose.msra.mxu0 0.0
    %1674 = vmatprep.subr.mxu0 0.0
    %1675 = vmatpush1.xpose.msra.mxu0 0.0
    %1676 = vmatprep.subr.mxu0 0.0
    %1677 = vmatpush1.xpose.msra.mxu0 0.0
    %1678 = vmatprep.subr.mxu0 0.0
    %1679 = vmatpush1.xpose.msra.mxu0 0.0
    %1680 = vmatprep.subr.mxu0 0.0
    %1681 = vmatpush1.xpose.msra.mxu0 0.0
    %1682 = vmatprep.mubr.f32.mxu0 0.0
    %1683 = vmatmul.mubr.f32.gmra.mrb[0].mxu0 %v1614
    %v1684 = vpop.f32.mrb[0].mxu0
    %v1685 = vadd.f32 0.0, %v1684
    %v1686 = vpop.f32.mrb[0].mxu0
    %1687 = vdwg.mxu0
    %v1688 = vsel %vm182, %v1685, -inf
    %1689 = vmax.xlane.f32.xlu0 %v1688
    %v1690 = vpop.xlane.xlu0 %1689
    %v1691 = vsub.f32 %v1685, %v1690
    %v1692 = vmul.f32 %v1691, 1.442695
    %v1693 = vpow.pop %v1692
    %v1694 = vsel %vm182, %v1693, 0.0
    %1695 = vadd.xlane.f32.xlu0 %v1694
    %v1696 = vpop.xlane.xlu0 %1695
    %v1697 = vrcp.pop %v1696
    %v1698 = vmul.f32 %v1693, %v1697
    %1699 = vrot.lane.b32.xlu0 %v174, 48
    %v1700 = vpop.permute.xlu0 %1699
    %v1703 = vsel %vm182, %v1698, 0
    %1705 = vmatprep.subr.mxu0 0.0
    %1706 = vmatpush1.msra.mxu0 %v1700
    %1707 = vmatprep.subr.mxu0 0.0
    %1708 = vmatpush1.msra.mxu0 0.0
    %1709 = vmatprep.subr.mxu0 0.0
    %1710 = vmatpush1.msra.mxu0 0.0
    %1711 = vmatprep.subr.mxu0 0.0
    %1712 = vmatpush1.msra.mxu0 0.0
    %1713 = vmatprep.subr.mxu0 0.0
    %1714 = vmatpush1.msra.mxu0 0.0
    %1715 = vmatprep.subr.mxu0 0.0
    %1716 = vmatpush1.msra.mxu0 0.0
    %1717 = vmatprep.subr.mxu0 0.0
    %1718 = vmatpush1.msra.mxu0 0.0
    %1719 = vmatprep.subr.mxu0 0.0
    %1720 = vmatpush1.msra.mxu0 0.0
    %1721 = vmatprep.subr.mxu0 0.0
    %1722 = vmatpush1.msra.mxu0 0.0
    %1723 = vmatprep.subr.mxu0 0.0
    %1724 = vmatpush1.msra.mxu0 0.0
    %1725 = vmatprep.subr.mxu0 0.0
    %1726 = vmatpush1.msra.mxu0 0.0
    %1727 = vmatprep.subr.mxu0 0.0
    %1728 = vmatpush1.msra.mxu0 0.0
    %1729 = vmatprep.subr.mxu0 0.0
    %1730 = vmatpush1.msra.mxu0 0.0
    %1731 = vmatprep.subr.mxu0 0.0
    %1732 = vmatpush1.msra.mxu0 0.0
    %1733 = vmatprep.subr.mxu0 0.0
    %1734 = vmatpush1.msra.mxu0 0.0
    %1735 = vmatprep.subr.mxu0 0.0
    %1736 = vmatpush1.msra.mxu0 0.0
    %1737 = vmatprep.subr.mxu0 0.0
    %1738 = vmatpush1.msra.mxu0 0.0
    %1739 = vmatprep.subr.mxu0 0.0
    %1740 = vmatpush1.msra.mxu0 0.0
    %1741 = vmatprep.subr.mxu0 0.0
    %1742 = vmatpush1.msra.mxu0 0.0
    %1743 = vmatprep.subr.mxu0 0.0
    %1744 = vmatpush1.msra.mxu0 0.0
    %1745 = vmatprep.subr.mxu0 0.0
    %1746 = vmatpush1.msra.mxu0 0.0
    %1747 = vmatprep.subr.mxu0 0.0
    %1748 = vmatpush1.msra.mxu0 0.0
    %1749 = vmatprep.subr.mxu0 0.0
    %1750 = vmatpush1.msra.mxu0 0.0
    %1751 = vmatprep.subr.mxu0 0.0
    %1752 = vmatpush1.msra.mxu0 0.0
    %1753 = vmatprep.subr.mxu0 0.0
    %1754 = vmatpush1.msra.mxu0 0.0
    %1755 = vmatprep.subr.mxu0 0.0
    %1756 = vmatpush1.msra.mxu0 0.0
    %1757 = vmatprep.subr.mxu0 0.0
    %1758 = vmatpush1.msra.mxu0 0.0
    %1759 = vmatprep.subr.mxu0 0.0
    %1760 = vmatpush1.msra.mxu0 0.0
    %1761 = vmatprep.subr.mxu0 0.0
    %1762 = vmatpush1.msra.mxu0 0.0
    %1763 = vmatprep.subr.mxu0 0.0
    %1764 = vmatpush1.msra.mxu0 0.0
    %1765 = vmatprep.subr.mxu0 0.0
    %1766 = vmatpush1.msra.mxu0 0.0
    %1767 = vmatprep.subr.mxu0 0.0
    %1768 = vmatpush1.msra.mxu0 0.0
    %1769 = vmatprep.mubr.f32.mxu0 0.0
    %1770 = vmatmul.mubr.f32.gmra.mrb[0].mxu0 %v1703
    %v1771 = vpop.f32.mrb[0].mxu0
    %v1772 = vadd.f32 0.0, %v1771
    %v1773 = vpop.f32.mrb[0].mxu0
    %1774 = vdwg.mxu0
    %v1776 = vsel %vm182, %v1772, 0
    %1778 = vmatprep.subr.mxu0 0.0
    %1779 = vmatpush1.msra.mxu0 %v64
    %1780 = vmatprep.subr.mxu0 0.0
    %1781 = vmatpush1.msra.mxu0 0.0
    %1782 = vmatprep.subr.mxu0 0.0
    %1783 = vmatpush1.msra.mxu0 0.0
    %1784 = vmatprep.subr.mxu0 0.0
    %1785 = vmatpush1.msra.mxu0 0.0
    %1786 = vmatprep.subr.mxu0 0.0
    %1787 = vmatpush1.msra.mxu0 0.0
    %1788 = vmatprep.subr.mxu0 0.0
    %1789 = vmatpush1.msra.mxu0 0.0
    %1790 = vmatprep.subr.mxu0 0.0
    %1791 = vmatpush1.msra.mxu0 0.0
    %1792 = vmatprep.subr.mxu0 0.0
    %1793 = vmatpush1.msra.mxu0 0.0
    %1794 = vmatprep.subr.mxu0 0.0
    %1795 = vmatpush1.msra.mxu0 0.0
    %1796 = vmatprep.subr.mxu0 0.0
    %1797 = vmatpush1.msra.mxu0 0.0
    %1798 = vmatprep.subr.mxu0 0.0
    %1799 = vmatpush1.msra.mxu0 0.0
    %1800 = vmatprep.subr.mxu0 0.0
    %1801 = vmatpush1.msra.mxu0 0.0
    %1802 = vmatprep.subr.mxu0 0.0
    %1803 = vmatpush1.msra.mxu0 0.0
    %1804 = vmatprep.subr.mxu0 0.0
    %1805 = vmatpush1.msra.mxu0 0.0
    %1806 = vmatprep.subr.mxu0 0.0
    %1807 = vmatpush1.msra.mxu0 0.0
    %1808 = vmatprep.subr.mxu0 0.0
    %1809 = vmatpush1.msra.mxu0 0.0
    %1810 = vmatprep.subr.mxu0 0.0
    %1811 = vmatpush1.msra.mxu0 0.0
    %1812 = vmatprep.subr.mxu0 0.0
    %1813 = vmatpush1.msra.mxu0 0.0
    %1814 = vmatprep.subr.mxu0 0.0
    %1815 = vmatpush1.msra.mxu0 0.0
    %1816 = vmatprep.subr.mxu0 0.0
    %1817 = vmatpush1.msra.mxu0 0.0
    %1818 = vmatprep.subr.mxu0 0.0
    %1819 = vmatpush1.msra.mxu0 0.0
    %1820 = vmatprep.subr.mxu0 0.0
    %1821 = vmatpush1.msra.mxu0 0.0
    %1822 = vmatprep.subr.mxu0 0.0
    %1823 = vmatpush1.msra.mxu0 0.0
    %1824 = vmatprep.subr.mxu0 0.0
    %1825 = vmatpush1.msra.mxu0 0.0
    %1826 = vmatprep.subr.mxu0 0.0
    %1827 = vmatpush1.msra.mxu0 0.0
    %1828 = vmatprep.subr.mxu0 0.0
    %1829 = vmatpush1.msra.mxu0 0.0
    %1830 = vmatprep.subr.mxu0 0.0
    %1831 = vmatpush1.msra.mxu0 0.0
    %1832 = vmatprep.subr.mxu0 0.0
    %1833 = vmatpush1.msra.mxu0 0.0
    %1834 = vmatprep.subr.mxu0 0.0
    %1835 = vmatpush1.msra.mxu0 0.0
    %1836 = vmatprep.subr.mxu0 0.0
    %1837 = vmatpush1.msra.mxu0 0.0
    %1838 = vmatprep.subr.mxu0 0.0
    %1839 = vmatpush1.msra.mxu0 0.0
    %1840 = vmatprep.subr.mxu0 0.0
    %1841 = vmatpush1.msra.mxu0 0.0
    %1842 = vmatprep.mubr.f32.mxu0 0.0
    %1843 = vmatmul.mubr.f32.gmra.mrb[0].mxu0 %v1776
    %v1844 = vpop.f32.mrb[0].mxu0
    %v1845 = vadd.f32 0.0, %v1844
    %v1846 = vpop.f32.mrb[0].mxu0
    %1847 = vdwg.mxu0
    %v1848 = vadd.f32 %v1607, %v1845
    %1849 = vrot.lane.b32.xlu0 %v178, 104
    %v1850 = vpop.permute.xlu0 %1849
    %1851 = vrot.lane.b32.xlu0 %v174, 72
    %v1852 = vpop.permute.xlu0 %1851
    %v1853 = vsel %vm182, %v1850, 0
    %v1855 = vsel %vm182, %v1852, 0
    %1857 = vmatprep.subr.mxu0 0.0
    %1858 = vmatpush1.xpose.msra.mxu0 %v1855
    %1859 = vmatprep.subr.mxu0 0.0
    %1860 = vmatpush1.xpose.msra.mxu0 0.0
    %1861 = vmatprep.subr.mxu0 0.0
    %1862 = vmatpush1.xpose.msra.mxu0 0.0
    %1863 = vmatprep.subr.mxu0 0.0
    %1864 = vmatpush1.xpose.msra.mxu0 0.0
    %1865 = vmatprep.subr.mxu0 0.0
    %1866 = vmatpush1.xpose.msra.mxu0 0.0
    %1867 = vmatprep.subr.mxu0 0.0
    %1868 = vmatpush1.xpose.msra.mxu0 0.0
    %1869 = vmatprep.subr.mxu0 0.0
    %1870 = vmatpush1.xpose.msra.mxu0 0.0
    %1871 = vmatprep.subr.mxu0 0.0
    %1872 = vmatpush1.xpose.msra.mxu0 0.0
    %1873 = vmatprep.subr.mxu0 0.0
    %1874 = vmatpush1.xpose.msra.mxu0 0.0
    %1875 = vmatprep.subr.mxu0 0.0
    %1876 = vmatpush1.xpose.msra.mxu0 0.0
    %1877 = vmatprep.subr.mxu0 0.0
    %1878 = vmatpush1.xpose.msra.mxu0 0.0
    %1879 = vmatprep.subr.mxu0 0.0
    %1880 = vmatpush1.xpose.msra.mxu0 0.0
    %1881 = vmatprep.subr.mxu0 0.0
    %1882 = vmatpush1.xpose.msra.mxu0 0.0
    %1883 = vmatprep.subr.mxu0 0.0
    %1884 = vmatpush1.xpose.msra.mxu0 0.0
    %1885 = vmatprep.subr.mxu0 0.0
    %1886 = vmatpush1.xpose.msra.mxu0 0.0
    %1887 = vmatprep.subr.mxu0 0.0
    %1888 = vmatpush1.xpose.msra.mxu0 0.0
    %1889 = vmatprep.subr.mxu0 0.0
    %1890 = vmatpush1.xpose.msra.mxu0 0.0
    %1891 = vmatprep.subr.mxu0 0.0
    %1892 = vmatpush1.xpose.msra.mxu0 0.0
    %1893 = vmatprep.subr.mxu0 0.0
    %1894 = vmatpush1.xpose.msra.mxu0 0.0
    %1895 = vmatprep.subr.mxu0 0.0
    %1896 = vmatpush1.xpose.msra.mxu0 0.0
    %1897 = vmatprep.subr.mxu0 0.0
    %1898 = vmatpush1.xpose.msra.mxu0 0.0
    %1899 = vmatprep.subr.mxu0 0.0
    %1900 = vmatpush1.xpose.msra.mxu0 0.0
    %1901 = vmatprep.subr.mxu0 0.0
    %1902 = vmatpush1.xpose.msra.mxu0 0.0
    %1903 = vmatprep.subr.mxu0 0.0
    %1904 = vmatpush1.xpose.msra.mxu0 0.0
    %1905 = vmatprep.subr.mxu0 0.0
    %1906 = vmatpush1.xpose.msra.mxu0 0.0
    %1907 = vmatprep.subr.mxu0 0.0
    %1908 = vmatpush1.xpose.msra.mxu0 0.0
    %1909 = vmatprep.subr.mxu0 0.0
    %1910 = vmatpush1.xpose.msra.mxu0 0.0
    %1911 = vmatprep.subr.mxu0 0.0
    %1912 = vmatpush1.xpose.msra.mxu0 0.0
    %1913 = vmatprep.subr.mxu0 0.0
    %1914 = vmatpush1.xpose.msra.mxu0 0.0
    %1915 = vmatprep.subr.mxu0 0.0
    %1916 = vmatpush1.xpose.msra.mxu0 0.0
    %1917 = vmatprep.subr.mxu0 0.0
    %1918 = vmatpush1.xpose.msra.mxu0 0.0
    %1919 = vmatprep.subr.mxu0 0.0
    %1920 = vmatpush1.xpose.msra.mxu0 0.0
    %1921 = vmatprep.mubr.f32.mxu0 0.0
    %1922 = vmatmul.mubr.f32.gmra.mrb[0].mxu0 %v1853
    %v1923 = vpop.f32.mrb[0].mxu0
    %v1924 = vadd.f32 0.0, %v1923
    %v1925 = vpop.f32.mrb[0].mxu0
    %1926 = vdwg.mxu0
    %v1927 = vsel %vm182, %v1924, -inf
    %1928 = vmax.xlane.f32.xlu0 %v1927
    %v1929 = vpop.xlane.xlu0 %1928
    %v1930 = vsub.f32 %v1924, %v1929
    %v1931 = vmul.f32 %v1930, 1.442695
    %v1932 = vpow.pop %v1931
    %v1933 = vsel %vm182, %v1932, 0.0
    %1934 = vadd.xlane.f32.xlu0 %v1933
    %v1935 = vpop.xlane.xlu0 %1934
    %v1936 = vrcp.pop %v1935
    %v1937 = vmul.f32 %v1932, %v1936
    %1938 = vrot.lane.b32.xlu0 %v174, 40
    %v1939 = vpop.permute.xlu0 %1938
    %v1942 = vsel %vm182, %v1937, 0
    %1944 = vmatprep.subr.mxu0 0.0
    %1945 = vmatpush1.msra.mxu0 %v1939
    %1946 = vmatprep.subr.mxu0 0.0
    %1947 = vmatpush1.msra.mxu0 0.0
    %1948 = vmatprep.subr.mxu0 0.0
    %1949 = vmatpush1.msra.mxu0 0.0
    %1950 = vmatprep.subr.mxu0 0.0
    %1951 = vmatpush1.msra.mxu0 0.0
    %1952 = vmatprep.subr.mxu0 0.0
    %1953 = vmatpush1.msra.mxu0 0.0
    %1954 = vmatprep.subr.mxu0 0.0
    %1955 = vmatpush1.msra.mxu0 0.0
    %1956 = vmatprep.subr.mxu0 0.0
    %1957 = vmatpush1.msra.mxu0 0.0
    %1958 = vmatprep.subr.mxu0 0.0
    %1959 = vmatpush1.msra.mxu0 0.0
    %1960 = vmatprep.subr.mxu0 0.0
    %1961 = vmatpush1.msra.mxu0 0.0
    %1962 = vmatprep.subr.mxu0 0.0
    %1963 = vmatpush1.msra.mxu0 0.0
    %1964 = vmatprep.subr.mxu0 0.0
    %1965 = vmatpush1.msra.mxu0 0.0
    %1966 = vmatprep.subr.mxu0 0.0
    %1967 = vmatpush1.msra.mxu0 0.0
    %1968 = vmatprep.subr.mxu0 0.0
    %1969 = vmatpush1.msra.mxu0 0.0
    %1970 = vmatprep.subr.mxu0 0.0
    %1971 = vmatpush1.msra.mxu0 0.0
    %1972 = vmatprep.subr.mxu0 0.0
    %1973 = vmatpush1.msra.mxu0 0.0
    %1974 = vmatprep.subr.mxu0 0.0
    %1975 = vmatpush1.msra.mxu0 0.0
    %1976 = vmatprep.subr.mxu0 0.0
    %1977 = vmatpush1.msra.mxu0 0.0
    %1978 = vmatprep.subr.mxu0 0.0
    %1979 = vmatpush1.msra.mxu0 0.0
    %1980 = vmatprep.subr.mxu0 0.0
    %1981 = vmatpush1.msra.mxu0 0.0
    %1982 = vmatprep.subr.mxu0 0.0
    %1983 = vmatpush1.msra.mxu0 0.0
    %1984 = vmatprep.subr.mxu0 0.0
    %1985 = vmatpush1.msra.mxu0 0.0
    %1986 = vmatprep.subr.mxu0 0.0
    %1987 = vmatpush1.msra.mxu0 0.0
    %1988 = vmatprep.subr.mxu0 0.0
    %1989 = vmatpush1.msra.mxu0 0.0
    %1990 = vmatprep.subr.mxu0 0.0
    %1991 = vmatpush1.msra.mxu0 0.0
    %1992 = vmatprep.subr.mxu0 0.0
    %1993 = vmatpush1.msra.mxu0 0.0
    %1994 = vmatprep.subr.mxu0 0.0
    %1995 = vmatpush1.msra.mxu0 0.0
    %1996 = vmatprep.subr.mxu0 0.0
    %1997 = vmatpush1.msra.mxu0 0.0
    %1998 = vmatprep.subr.mxu0 0.0
    %1999 = vmatpush1.msra.mxu0 0.0
    %2000 = vmatprep.subr.mxu0 0.0
    %2001 = vmatpush1.msra.mxu0 0.0
    %2002 = vmatprep.subr.mxu0 0.0
    %2003 = vmatpush1.msra.mxu0 0.0
    %2004 = vmatprep.subr.mxu0 0.0
    %2005 = vmatpush1.msra.mxu0 0.0
    %2006 = vmatprep.subr.mxu0 0.0
    %2007 = vmatpush1.msra.mxu0 0.0
    %2008 = vmatprep.mubr.f32.mxu0 0.0
    %2009 = vmatmul.mubr.f32.gmra.mrb[0].mxu0 %v1942
    %v2010 = vpop.f32.mrb[0].mxu0
    %v2011 = vadd.f32 0.0, %v2010
    %v2012 = vpop.f32.mrb[0].mxu0
    %2013 = vdwg.mxu0
    %v2015 = vsel %vm182, %v2011, 0
    %2017 = vmatprep.subr.mxu0 0.0
    %2018 = vmatpush1.msra.mxu0 %v65
    %2019 = vmatprep.subr.mxu0 0.0
    %2020 = vmatpush1.msra.mxu0 0.0
    %2021 = vmatprep.subr.mxu0 0.0
    %2022 = vmatpush1.msra.mxu0 0.0
    %2023 = vmatprep.subr.mxu0 0.0
    %2024 = vmatpush1.msra.mxu0 0.0
    %2025 = vmatprep.subr.mxu0 0.0
    %2026 = vmatpush1.msra.mxu0 0.0
    %2027 = vmatprep.subr.mxu0 0.0
    %2028 = vmatpush1.msra.mxu0 0.0
    %2029 = vmatprep.subr.mxu0 0.0
    %2030 = vmatpush1.msra.mxu0 0.0
    %2031 = vmatprep.subr.mxu0 0.0
    %2032 = vmatpush1.msra.mxu0 0.0
    %2033 = vmatprep.subr.mxu0 0.0
    %2034 = vmatpush1.msra.mxu0 0.0
    %2035 = vmatprep.subr.mxu0 0.0
    %2036 = vmatpush1.msra.mxu0 0.0
    %2037 = vmatprep.subr.mxu0 0.0
    %2038 = vmatpush1.msra.mxu0 0.0
    %2039 = vmatprep.subr.mxu0 0.0
    %2040 = vmatpush1.msra.mxu0 0.0
    %2041 = vmatprep.subr.mxu0 0.0
    %2042 = vmatpush1.msra.mxu0 0.0
    %2043 = vmatprep.subr.mxu0 0.0
    %2044 = vmatpush1.msra.mxu0 0.0
    %2045 = vmatprep.subr.mxu0 0.0
    %2046 = vmatpush1.msra.mxu0 0.0
    %2047 = vmatprep.subr.mxu0 0.0
    %2048 = vmatpush1.msra.mxu0 0.0
    %2049 = vmatprep.subr.mxu0 0.0
    %2050 = vmatpush1.msra.mxu0 0.0
    %2051 = vmatprep.subr.mxu0 0.0
    %2052 = vmatpush1.msra.mxu0 0.0
    %2053 = vmatprep.subr.mxu0 0.0
    %2054 = vmatpush1.msra.mxu0 0.0
    %2055 = vmatprep.subr.mxu0 0.0
    %2056 = vmatpush1.msra.mxu0 0.0
    %2057 = vmatprep.subr.mxu0 0.0
    %2058 = vmatpush1.msra.mxu0 0.0
    %2059 = vmatprep.subr.mxu0 0.0
    %2060 = vmatpush1.msra.mxu0 0.0
    %2061 = vmatprep.subr.mxu0 0.0
    %2062 = vmatpush1.msra.mxu0 0.0
    %2063 = vmatprep.subr.mxu0 0.0
    %2064 = vmatpush1.msra.mxu0 0.0
    %2065 = vmatprep.subr.mxu0 0.0
    %2066 = vmatpush1.msra.mxu0 0.0
    %2067 = vmatprep.subr.mxu0 0.0
    %2068 = vmatpush1.msra.mxu0 0.0
    %2069 = vmatprep.subr.mxu0 0.0
    %2070 = vmatpush1.msra.mxu0 0.0
    %2071 = vmatprep.subr.mxu0 0.0
    %2072 = vmatpush1.msra.mxu0 0.0
    %2073 = vmatprep.subr.mxu0 0.0
    %2074 = vmatpush1.msra.mxu0 0.0
    %2075 = vmatprep.subr.mxu0 0.0
    %2076 = vmatpush1.msra.mxu0 0.0
    %2077 = vmatprep.subr.mxu0 0.0
    %2078 = vmatpush1.msra.mxu0 0.0
    %2079 = vmatprep.subr.mxu0 0.0
    %2080 = vmatpush1.msra.mxu0 0.0
    %2081 = vmatprep.mubr.f32.mxu0 0.0
    %2082 = vmatmul.mubr.f32.gmra.mrb[0].mxu0 %v2015
    %v2083 = vpop.f32.mrb[0].mxu0
    %v2084 = vadd.f32 0.0, %v2083
    %v2085 = vpop.f32.mrb[0].mxu0
    %2086 = vdwg.mxu0
    %v2087 = vadd.f32 %v1848, %v2084
    %v2088 = vlaneseq
    %v2089 = vshrl.u32 %v2088, 7
    %v2090 = vsub.s32 0, %v2089
    %v2091 = vrot.slane %v83, %v2090
    %v2092 = vadd.f32 %v1133, %v2091
    %v2093 = vadd.f32 %v2087, %v2091
    %v2094 = vadd.f32 %v56, %v2092
    %v2095 = vadd.f32 %v57, %v2093
    %v2096 = vsel %vm95, %v2094, 0.0
    %2097 = vadd.xlane.f32.xlu0 %v2096
    %v2098 = vpop.xlane.xlu0 %2097
    %v2099 = vsel %vm95, %v2095, 0.0
    %2100 = vadd.xlane.f32.xlu0 %v2099
    %v2101 = vpop.xlane.xlu0 %2100
    %v2102 = vrcp.pop 32.0
    %v2103 = vmul.f32 %v2098, %v2102
    %v2104 = vmul.f32 %v2101, %v2102
    %v2105 = vsub.f32 %v2094, %v2103
    %v2106 = vsub.f32 %v2095, %v2104
    %v2107 = vmul.f32 %v2105, %v2105
    %v2108 = vmul.f32 %v2106, %v2106
    %v2109 = vsel %vm95, %v2107, 0.0
    %2110 = vadd.xlane.f32.xlu0 %v2109
    %v2111 = vpop.xlane.xlu0 %2110
    %v2112 = vsel %vm95, %v2108, 0.0
    %2113 = vadd.xlane.f32.xlu0 %v2112
    %v2114 = vpop.xlane.xlu0 %2113
    %v2115 = vmul.f32 %v2111, %v2102
    %v2116 = vmul.f32 %v2114, %v2102
    %v2117 = vadd.f32 %v2115, 1e-05
    %v2118 = vadd.f32 %v2116, 1e-05
    %v2119 = vrsqrt.pop %v2117
    %v2120 = vrsqrt.pop %v2118
    %v2121 = vmul.f32 %v2105, %v2119
    %v2122 = vmul.f32 %v2106, %v2120
    %v2123 = vlaneseq
    %v2124 = vshrl.u32 %v2123, 7
    %v2125 = vsub.s32 0, %v2124
    %v2126 = vrot.slane %v84, %v2125
    %v2127 = vmul.f32 %v2121, %v2126
    %v2128 = vmul.f32 %v2122, %v2126
    %v2129 = vlaneseq
    %v2130 = vshrl.u32 %v2129, 7
    %v2131 = vsub.s32 0, %v2130
    %v2132 = vrot.slane %v85, %v2131
    %v2133 = vadd.f32 %v2127, %v2132
    %v2134 = vadd.f32 %v2128, %v2132
    %v2135 = vlaneseq
    %v2136 = vshrl.u32 %v2135, 7
    %v2137 = vsub.s32 0, %v2136
    %v2138 = vrot.slane %v86, %v2137
    %v2140 = vsel %vm95, %v2133, 0
    %v2143 = vsel %vm95, %v2134, 0
    %2145 = vmatprep.subr.mxu0 0.0
    %2146 = vmatpush1.msra.mxu0 %v66
    %2147 = vmatprep.subr.mxu0 0.0
    %2148 = vmatpush1.msra.mxu0 %v67
    %2149 = vmatprep.subr.mxu0 0.0
    %2150 = vmatpush1.msra.mxu0 %v68
    %2151 = vmatprep.subr.mxu0 0.0
    %2152 = vmatpush1.msra.mxu0 %v69
    %2153 = vmatprep.subr.mxu0 0.0
    %2154 = vmatpush1.msra.mxu0 0.0
    %2155 = vmatprep.subr.mxu0 0.0
    %2156 = vmatpush1.msra.mxu0 0.0
    %2157 = vmatprep.subr.mxu0 0.0
    %2158 = vmatpush1.msra.mxu0 0.0
    %2159 = vmatprep.subr.mxu0 0.0
    %2160 = vmatpush1.msra.mxu0 0.0
    %2161 = vmatprep.subr.mxu0 0.0
    %2162 = vmatpush1.msra.mxu0 0.0
    %2163 = vmatprep.subr.mxu0 0.0
    %2164 = vmatpush1.msra.mxu0 0.0
    %2165 = vmatprep.subr.mxu0 0.0
    %2166 = vmatpush1.msra.mxu0 0.0
    %2167 = vmatprep.subr.mxu0 0.0
    %2168 = vmatpush1.msra.mxu0 0.0
    %2169 = vmatprep.subr.mxu0 0.0
    %2170 = vmatpush1.msra.mxu0 0.0
    %2171 = vmatprep.subr.mxu0 0.0
    %2172 = vmatpush1.msra.mxu0 0.0
    %2173 = vmatprep.subr.mxu0 0.0
    %2174 = vmatpush1.msra.mxu0 0.0
    %2175 = vmatprep.subr.mxu0 0.0
    %2176 = vmatpush1.msra.mxu0 0.0
    %2177 = vmatprep.subr.mxu0 0.0
    %2178 = vmatpush1.msra.mxu0 0.0
    %2179 = vmatprep.subr.mxu0 0.0
    %2180 = vmatpush1.msra.mxu0 0.0
    %2181 = vmatprep.subr.mxu0 0.0
    %2182 = vmatpush1.msra.mxu0 0.0
    %2183 = vmatprep.subr.mxu0 0.0
    %2184 = vmatpush1.msra.mxu0 0.0
    %2185 = vmatprep.subr.mxu0 0.0
    %2186 = vmatpush1.msra.mxu0 0.0
    %2187 = vmatprep.subr.mxu0 0.0
    %2188 = vmatpush1.msra.mxu0 0.0
    %2189 = vmatprep.subr.mxu0 0.0
    %2190 = vmatpush1.msra.mxu0 0.0
    %2191 = vmatprep.subr.mxu0 0.0
    %2192 = vmatpush1.msra.mxu0 0.0
    %2193 = vmatprep.subr.mxu0 0.0
    %2194 = vmatpush1.msra.mxu0 0.0
    %2195 = vmatprep.subr.mxu0 0.0
    %2196 = vmatpush1.msra.mxu0 0.0
    %2197 = vmatprep.subr.mxu0 0.0
    %2198 = vmatpush1.msra.mxu0 0.0
    %2199 = vmatprep.subr.mxu0 0.0
    %2200 = vmatpush1.msra.mxu0 0.0
    %2201 = vmatprep.subr.mxu0 0.0
    %2202 = vmatpush1.msra.mxu0 0.0
    %2203 = vmatprep.subr.mxu0 0.0
    %2204 = vmatpush1.msra.mxu0 0.0
    %2205 = vmatprep.subr.mxu0 0.0
    %2206 = vmatpush1.msra.mxu0 0.0
    %2207 = vmatprep.subr.mxu0 0.0
    %2208 = vmatpush1.msra.mxu0 0.0
    %2209 = vmatprep.mubr.f32.mxu0 0.0
    %2210 = vmatmul.mubr.f32.gmra.mrb[0].mxu0 %v2140
    %v2211 = vpop.f32.mrb[0].mxu0
    %v2212 = vadd.f32 %v2138, %v2211
    %v2213 = vpop.f32.mrb[0].mxu0
    %2214 = vmatprep.mubr.f32.mxu0 0.0
    %2215 = vmatmul.mubr.f32.gmra.mrb[0].mxu0 %v2143
    %v2216 = vpop.f32.mrb[0].mxu0
    %v2217 = vadd.f32 %v2138, %v2216
    %v2218 = vpop.f32.mrb[0].mxu0
    %2219 = vdwg.mxu0
    %v2220 = vmax.f32 %v2212, 0.0
    %v2221 = vmax.f32 %v2217, 0.0
    %v2222 = vlaneseq
    %v2223 = vshrl.u32 %v2222, 7
    %v2224 = vsub.s32 0, %v2223
    %v2225 = vrot.slane %v87, %v2224
    %vm2226 = vcmask 523264
    %v2228 = vsel %vm2226, %v2220, 0
    %v2231 = vsel %vm2226, %v2221, 0
    %2233 = vmatprep.subr.mxu0 0.0
    %2234 = vmatpush1.msra.mxu0 %v70
    %2235 = vmatprep.subr.mxu0 0.0
    %2236 = vmatpush1.msra.mxu0 %v71
    %2237 = vmatprep.subr.mxu0 0.0
    %2238 = vmatpush1.msra.mxu0 %v72
    %2239 = vmatprep.subr.mxu0 0.0
    %2240 = vmatpush1.msra.mxu0 %v73
    %2241 = vmatprep.subr.mxu0 0.0
    %2242 = vmatpush1.msra.mxu0 %v74
    %2243 = vmatprep.subr.mxu0 0.0
    %2244 = vmatpush1.msra.mxu0 %v75
    %2245 = vmatprep.subr.mxu0 0.0
    %2246 = vmatpush1.msra.mxu0 %v76
    %2247 = vmatprep.subr.mxu0 0.0
    %2248 = vmatpush1.msra.mxu0 %v77
    %2249 = vmatprep.subr.mxu0 0.0
    %2250 = vmatpush1.msra.mxu0 0.0
    %2251 = vmatprep.subr.mxu0 0.0
    %2252 = vmatpush1.msra.mxu0 0.0
    %2253 = vmatprep.subr.mxu0 0.0
    %2254 = vmatpush1.msra.mxu0 0.0
    %2255 = vmatprep.subr.mxu0 0.0
    %2256 = vmatpush1.msra.mxu0 0.0
    %2257 = vmatprep.subr.mxu0 0.0
    %2258 = vmatpush1.msra.mxu0 0.0
    %2259 = vmatprep.subr.mxu0 0.0
    %2260 = vmatpush1.msra.mxu0 0.0
    %2261 = vmatprep.subr.mxu0 0.0
    %2262 = vmatpush1.msra.mxu0 0.0
    %2263 = vmatprep.subr.mxu0 0.0
    %2264 = vmatpush1.msra.mxu0 0.0
    %2265 = vmatprep.subr.mxu0 0.0
    %2266 = vmatpush1.msra.mxu0 0.0
    %2267 = vmatprep.subr.mxu0 0.0
    %2268 = vmatpush1.msra.mxu0 0.0
    %2269 = vmatprep.subr.mxu0 0.0
    %2270 = vmatpush1.msra.mxu0 0.0
    %2271 = vmatprep.subr.mxu0 0.0
    %2272 = vmatpush1.msra.mxu0 0.0
    %2273 = vmatprep.subr.mxu0 0.0
    %2274 = vmatpush1.msra.mxu0 0.0
    %2275 = vmatprep.subr.mxu0 0.0
    %2276 = vmatpush1.msra.mxu0 0.0
    %2277 = vmatprep.subr.mxu0 0.0
    %2278 = vmatpush1.msra.mxu0 0.0
    %2279 = vmatprep.subr.mxu0 0.0
    %2280 = vmatpush1.msra.mxu0 0.0
    %2281 = vmatprep.subr.mxu0 0.0
    %2282 = vmatpush1.msra.mxu0 0.0
    %2283 = vmatprep.subr.mxu0 0.0
    %2284 = vmatpush1.msra.mxu0 0.0
    %2285 = vmatprep.subr.mxu0 0.0
    %2286 = vmatpush1.msra.mxu0 0.0
    %2287 = vmatprep.subr.mxu0 0.0
    %2288 = vmatpush1.msra.mxu0 0.0
    %2289 = vmatprep.subr.mxu0 0.0
    %2290 = vmatpush1.msra.mxu0 0.0
    %2291 = vmatprep.subr.mxu0 0.0
    %2292 = vmatpush1.msra.mxu0 0.0
    %2293 = vmatprep.subr.mxu0 0.0
    %2294 = vmatpush1.msra.mxu0 0.0
    %2295 = vmatprep.subr.mxu0 0.0
    %2296 = vmatpush1.msra.mxu0 0.0
    %2297 = vmatprep.mubr.f32.mxu0 0.0
    %2298 = vmatmul.mubr.f32.gmra.mrb[0].mxu0 %v2228
    %v2299 = vpop.f32.mrb[0].mxu0
    %v2300 = vadd.f32 %v2225, %v2299
    %v2301 = vpop.f32.mrb[0].mxu0
    %2302 = vmatprep.mubr.f32.mxu0 0.0
    %2303 = vmatmul.mubr.f32.gmra.mrb[0].mxu0 %v2231
    %v2304 = vpop.f32.mrb[0].mxu0
    %v2305 = vadd.f32 %v2225, %v2304
    %v2306 = vpop.f32.mrb[0].mxu0
    %2307 = vdwg.mxu0
    %v2308 = vadd.f32 %v2133, %v2300
    %v2309 = vadd.f32 %v2134, %v2305
    %v2310 = vsel %vm95, %v2308, 0.0
    %2311 = vadd.xlane.f32.xlu0 %v2310
    %v2312 = vpop.xlane.xlu0 %2311
    %v2313 = vsel %vm95, %v2309, 0.0
    %2314 = vadd.xlane.f32.xlu0 %v2313
    %v2315 = vpop.xlane.xlu0 %2314
    %v2316 = vmul.f32 %v2312, %v2102
    %v2317 = vmul.f32 %v2315, %v2102
    %v2318 = vsub.f32 %v2308, %v2316
    %v2319 = vsub.f32 %v2309, %v2317
    %v2320 = vmul.f32 %v2318, %v2318
    %v2321 = vmul.f32 %v2319, %v2319
    %v2322 = vsel %vm95, %v2320, 0.0
    %2323 = vadd.xlane.f32.xlu0 %v2322
    %v2324 = vpop.xlane.xlu0 %2323
    %v2325 = vsel %vm95, %v2321, 0.0
    %2326 = vadd.xlane.f32.xlu0 %v2325
    %v2327 = vpop.xlane.xlu0 %2326
    %v2328 = vmul.f32 %v2324, %v2102
    %v2329 = vmul.f32 %v2327, %v2102
    %v2330 = vadd.f32 %v2328, 1e-05
    %v2331 = vadd.f32 %v2329, 1e-05
    %v2332 = vrsqrt.pop %v2330
    %v2333 = vrsqrt.pop %v2331
    %v2334 = vmul.f32 %v2318, %v2332
    %v2335 = vmul.f32 %v2319, %v2333
    %v2336 = vlaneseq
    %v2337 = vshrl.u32 %v2336, 7
    %v2338 = vsub.s32 0, %v2337
    %v2339 = vrot.slane %v88, %v2338
    %v2340 = vmul.f32 %v2334, %v2339
    %v2341 = vmul.f32 %v2335, %v2339
    %v2342 = vlaneseq
    %v2343 = vshrl.u32 %v2342, 7
    %v2344 = vsub.s32 0, %v2343
    %v2345 = vrot.slane %v89, %v2344
    %v2346 = vadd.f32 %v2340, %v2345
    %v2347 = vadd.f32 %v2341, %v2345
    %v2348 = vlaneseq
    %v2349 = vshrl.u32 %v2348, 7
    %v2350 = vsub.s32 0, %v2349
    %v2351 = vrot.slane %v90, %v2350
    %v2353 = vsel %vm95, %v2346, 0
    %v2356 = vsel %vm95, %v2347, 0
    %2358 = vmatprep.subr.mxu0 0.0
    %2359 = vmatpush1.msra.mxu0 %v78
    %2360 = vmatprep.subr.mxu0 0.0
    %2361 = vmatpush1.msra.mxu0 %v79
    %2362 = vmatprep.subr.mxu0 0.0
    %2363 = vmatpush1.msra.mxu0 %v80
    %2364 = vmatprep.subr.mxu0 0.0
    %2365 = vmatpush1.msra.mxu0 %v81
    %2366 = vmatprep.subr.mxu0 0.0
    %2367 = vmatpush1.msra.mxu0 0.0
    %2368 = vmatprep.subr.mxu0 0.0
    %2369 = vmatpush1.msra.mxu0 0.0
    %2370 = vmatprep.subr.mxu0 0.0
    %2371 = vmatpush1.msra.mxu0 0.0
    %2372 = vmatprep.subr.mxu0 0.0
    %2373 = vmatpush1.msra.mxu0 0.0
    %2374 = vmatprep.subr.mxu0 0.0
    %2375 = vmatpush1.msra.mxu0 0.0
    %2376 = vmatprep.subr.mxu0 0.0
    %2377 = vmatpush1.msra.mxu0 0.0
    %2378 = vmatprep.subr.mxu0 0.0
    %2379 = vmatpush1.msra.mxu0 0.0
    %2380 = vmatprep.subr.mxu0 0.0
    %2381 = vmatpush1.msra.mxu0 0.0
    %2382 = vmatprep.subr.mxu0 0.0
    %2383 = vmatpush1.msra.mxu0 0.0
    %2384 = vmatprep.subr.mxu0 0.0
    %2385 = vmatpush1.msra.mxu0 0.0
    %2386 = vmatprep.subr.mxu0 0.0
    %2387 = vmatpush1.msra.mxu0 0.0
    %2388 = vmatprep.subr.mxu0 0.0
    %2389 = vmatpush1.msra.mxu0 0.0
    %2390 = vmatprep.subr.mxu0 0.0
    %2391 = vmatpush1.msra.mxu0 0.0
    %2392 = vmatprep.subr.mxu0 0.0
    %2393 = vmatpush1.msra.mxu0 0.0
    %2394 = vmatprep.subr.mxu0 0.0
    %2395 = vmatpush1.msra.mxu0 0.0
    %2396 = vmatprep.subr.mxu0 0.0
    %2397 = vmatpush1.msra.mxu0 0.0
    %2398 = vmatprep.subr.mxu0 0.0
    %2399 = vmatpush1.msra.mxu0 0.0
    %2400 = vmatprep.subr.mxu0 0.0
    %2401 = vmatpush1.msra.mxu0 0.0
    %2402 = vmatprep.subr.mxu0 0.0
    %2403 = vmatpush1.msra.mxu0 0.0
    %2404 = vmatprep.subr.mxu0 0.0
    %2405 = vmatpush1.msra.mxu0 0.0
    %2406 = vmatprep.subr.mxu0 0.0
    %2407 = vmatpush1.msra.mxu0 0.0
    %2408 = vmatprep.subr.mxu0 0.0
    %2409 = vmatpush1.msra.mxu0 0.0
    %2410 = vmatprep.subr.mxu0 0.0
    %2411 = vmatpush1.msra.mxu0 0.0
    %2412 = vmatprep.subr.mxu0 0.0
    %2413 = vmatpush1.msra.mxu0 0.0
    %2414 = vmatprep.subr.mxu0 0.0
    %2415 = vmatpush1.msra.mxu0 0.0
    %2416 = vmatprep.subr.mxu0 0.0
    %2417 = vmatpush1.msra.mxu0 0.0
    %2418 = vmatprep.subr.mxu0 0.0
    %2419 = vmatpush1.msra.mxu0 0.0
    %2420 = vmatprep.subr.mxu0 0.0
    %2421 = vmatpush1.msra.mxu0 0.0
    %2422 = vmatprep.mubr.f32.mxu0 0.0
    %2423 = vmatmul.mubr.f32.gmra.mrb[0].mxu0 %v2353
    %v2424 = vpop.f32.mrb[0].mxu0
    %v2425 = vadd.f32 %v2351, %v2424
    %v2426 = vpop.f32.mrb[0].mxu0
    %2427 = vmatprep.mubr.f32.mxu0 0.0
    %2428 = vmatmul.mubr.f32.gmra.mrb[0].mxu0 %v2356
    %v2429 = vpop.f32.mrb[0].mxu0
    %v2430 = vadd.f32 %v2351, %v2429
    %v2431 = vpop.f32.mrb[0].mxu0
    %2432 = vdwg.mxu0
    %2433 = vst [vmem:[#allocation8] sm:$0xff] %v2425
    %2434 = vst [vmem:[#allocation8 + $0x8] sm:$0xff] %v2430
    // Predicated region
    $region26: #{tpu_custom_call.1} parent=1 // pred_check
      _
    $region27: #{tpu_custom_call.1} parent=1 // pred_check_branch
      %2436 = sbr.rel (0) target = $region29
    $region28: #{tpu_custom_call.1} parent=1 // pred_region
      %s2438 = ssub.s32 256, 256
      %2439 = vsyncadd [#allocation4], %s2438
      %s2440 = sshll.u32 [#allocation8], 4
      %s2441 = int_to_ptr.vmem [resolvable:$true] %s2440
      %2446 = dma.vmem_to_hbm [thread:$0]  %s2441, 256, %s3, [#allocation4], 128, 128, 8
    $region29: #{tpu_custom_call.1} parent=1 // pred_fallthru
      _
    // Predicated region
    $region30: #{tpu_custom_call.1} parent=1 // pred_check
      _
    $region31: #{tpu_custom_call.1} parent=1 // pred_check_branch
      %2448 = sbr.rel (0) target = $region33
    $region32: #{tpu_custom_call.1} parent=1 // pred_region
      %2449 = dma.done [#allocation4], 256
    $region33: #{tpu_custom_call.1} parent=1 // pred_fallthru
      _
    %2450 = vsyncpa [#allocation3], 1
    %2451 = vsyncpa [#allocation6], 1
    %2452 = vsyncpa [#allocation4], 1

</llo_original>
